<compile_context>
chip_gen: v5e
topology: v5e:2x2
jax: 0.10.0
libtpu: 0.0.40
codegen_flags: <defaults>
</compile_context>

<pallas_src>
import functools

import jax
import jax.numpy as jnp
from jax.experimental import pallas as pl
from jax.experimental.pallas import tpu as pltpu

EPS = 1e-5
PAD = 128          # lane-padded feature width for every layer
N_HIDDEN = 5       # number of Linear+BN+ReLU blocks


def _round_up(x, m):
    return ((x + m - 1) // m) * m


def dqn_kernel(x_ref, w_ref, v_ref, out_ref, *, k1):
    # x_ref:   [B, k1]       observations, k1 = round_up(n_obs, 16)
    # w_ref:   [768, 128]    six 128x128 weight chunks ([in, out]); f32 or bf16
    # v_ref:   [16, 128]     rows 2i / 2i+1 = gamma_i / beta_i (i=0..4), row 10 = b6
    # out_ref: [B, 128]      padded Q-values (first n_actions lanes valid)
    inv_b = 1.0 / x_ref.shape[0]
    wd = w_ref.dtype                              # matmul operand dtype (f32 or bf16)

    def block(h, i, k_rows):
        w = w_ref[pl.ds(i * PAD, k_rows), :]                    # static, aligned slice
        y = jnp.dot(h.astype(wd), w, preferred_element_type=jnp.float32)   # MXU
        # one-pass batch moments (biased variance, training-mode BN)
        s1 = jnp.sum(y, axis=0, keepdims=True)
        s2 = jnp.sum(y * y, axis=0, keepdims=True)
        mu = s1 * inv_b
        var = jnp.maximum(s2 * inv_b - mu * mu, 0.0)            # clamp: no rsqrt(neg)
        gamma = v_ref[pl.ds(2 * i, 1), :]                       # adjacent rows ->
        beta = v_ref[pl.ds(2 * i + 1, 1), :]                    # same sublane tile
        scale = gamma * jax.lax.rsqrt(var + EPS)                # rsqrt -> EUP
        shift = beta - mu * scale
        return jnp.maximum(y * scale + shift, 0.0)              # fused BN + ReLU

    h = block(x_ref[...], 0, k1)                  # layer 1 uses only k1 weight rows
    for i in range(1, N_HIDDEN):
        h = block(h, i, PAD)

    w6 = w_ref[pl.ds(N_HIDDEN * PAD, PAD), :]
    b6 = v_ref[pl.ds(2 * N_HIDDEN, 1), :]
    out_ref[...] = jnp.dot(h.astype(wd), w6, preferred_element_type=jnp.float32) + b6


def pack_params(params, n_observations, n_actions, weight_dtype=jnp.float32):
    """Pack raw (PyTorch-layout) params into two lane-dense slabs.

    params = [w1,b1,g1,be1, ..., w5,b5,g5,be5, w6,b6]; weights are [in, out].
    Pre-BN biases b1..b5 are dropped (cancelled by BN mean subtraction).
    Padded columns get gamma=beta=0 so they stay exactly zero through BN+ReLU.
    Weight slab is cast to `weight_dtype` (bf16 recommended on v5e/v6e/v7x);
    the gamma/beta/b6 slab always stays f32.
    """
    k1 = _round_up(n_observations, 16)            # 16: bf16 sublane-pack granularity
    assert k1 <= PAD and n_actions <= PAD
    w_chunks, vec_rows = [], []
    idx = 0
    for _ in range(N_HIDDEN):
        w, _b, g, be = params[idx:idx + 4]        # _b: pre-BN bias, dropped
        idx += 4
        wp = jnp.zeros((PAD, PAD), jnp.float32).at[:w.shape[0], :w.shape[1]].set(w)
        w_chunks.append(wp)
        vec_rows.append(jnp.zeros((PAD,), jnp.float32).at[:g.shape[-1]].set(g.reshape(-1)))
        vec_rows.append(jnp.zeros((PAD,), jnp.float32).at[:be.shape[-1]].set(be.reshape(-1)))
    w6, b6 = params[idx:idx + 2]
    w_chunks.append(
        jnp.zeros((PAD, PAD), jnp.float32).at[:w6.shape[0], :w6.shape[1]].set(w6))
    vec_rows.append(jnp.zeros((PAD,), jnp.float32).at[:b6.shape[-1]].set(b6.reshape(-1)))
    while len(vec_rows) < 16:                     # pad to full sublane multiple
        vec_rows.append(jnp.zeros((PAD,), jnp.float32))

    w_slab = jnp.concatenate(w_chunks, axis=0).astype(weight_dtype)   # [768, 128]
    v_slab = jnp.stack(vec_rows, axis=0)                              # [16, 128] f32
    return w_slab, v_slab, k1


def dqn_forward(x, w_slab, v_slab, n_actions, k1):
    """x: [B, n_observations] float32. Returns [B, n_actions] float32."""
    B, n_obs = x.shape
    assert B >= 2, "training-mode BatchNorm1d requires batch size >= 2"
    assert n_obs <= k1
    x_p = x if n_obs == k1 else jnp.pad(x, ((0, 0), (0, k1 - n_obs)))

    w_bytes = int(w_slab.size) * w_slab.dtype.itemsize
    v_bytes = int(v_slab.size) * 4
    io_bytes = (B * k1 + B * PAD) * 4
    cost = pl.CostEstimate(
        flops=2 * B * PAD * (k1 + 5 * PAD),
        transcendentals=N_HIDDEN * PAD,
        bytes_accessed=w_bytes + v_bytes + io_bytes,
    )
    # Raise the scoped-VMEM limit only when a large batch needs it (v7x: 64 MiB phys).
    needed = 2 * io_bytes + w_bytes + v_bytes + (2 << 20)
    compiler_params = (
        pltpu.CompilerParams(vmem_limit_bytes=int(min(needed, 120 << 20)))
        if needed > (16 << 20) else None)

    vmem = pl.BlockSpec(memory_space=pltpu.MemorySpace.VMEM)
    out_p = pl.pallas_call(
        functools.partial(dqn_kernel, k1=k1),
        out_shape=jax.ShapeDtypeStruct((B, PAD), jnp.float32),
        in_specs=[vmem, vmem, vmem],
        out_specs=vmem,
        cost_estimate=cost,
        compiler_params=compiler_params,
    )(x_p, w_slab, v_slab)
    # Keep this slice: padded lanes are 0 and must not leak into e.g. an argmax.
    return out_p[:, :n_actions]


def init_params(key, n_observations, n_actions):
    """PyTorch-default init (Linear: U(-1/sqrt(in), 1/sqrt(in)); BN: gamma=1, beta=0).
    Linear weights stored pre-transposed as [in, out]."""
    dims = [n_observations, 64, 128, 128, 64, 32, n_actions]
    params = []
    keys = jax.random.split(key, 2 * (len(dims) - 1))
    for i in range(len(dims) - 1):
        fan_in, fan_out = dims[i], dims[i + 1]
        bound = 1.0 / jnp.sqrt(jnp.float32(fan_in))
        w = jax.random.uniform(keys[2 * i], (fan_in, fan_out), jnp.float32,
                               minval=-bound, maxval=bound)
        b = jax.random.uniform(keys[2 * i + 1], (1, fan_out), jnp.float32,
                               minval=-bound, maxval=bound)
        params.append(w)
        params.append(b)
        if i < len(dims) - 2:                 # hidden blocks carry BatchNorm
            params.append(jnp.ones((1, fan_out), jnp.float32))   # gamma
            params.append(jnp.zeros((1, fan_out), jnp.float32))  # beta
    return params


def reference_forward(x, params):
    """Plain-JAX reference of the exact PyTorch forward (biases included)."""
    h = x
    idx = 0
    for _ in range(N_HIDDEN):
        w, b, g, be = params[idx:idx + 4]
        idx += 4
        y = h @ w + b
        mu = jnp.mean(y, axis=0, keepdims=True)
        var = jnp.mean((y - mu) ** 2, axis=0, keepdims=True)
        y = (y - mu) / jnp.sqrt(var + EPS) * g + be
        h = jnp.maximum(y, 0.0)
    w, b = params[idx:idx + 2]
    return h @ w + b


if __name__ == "__main__":
    key = jax.random.PRNGKey(0)
    k_x, k_p = jax.random.split(key)

    B = 256                      # large enough to actually feed the MXU (review #1)
    n_observations = 16
    n_actions = 4

    x = jax.random.normal(k_x, (B, n_observations), jnp.float32)
    params = init_params(k_p, n_observations, n_actions)
    ref = reference_forward(x, params)

    # Exact f32-operand path (matches the f32 PyTorch/JAX reference tightly).
    w32, v32, k1 = pack_params(params, n_observations, n_actions, jnp.float32)
    out32 = jax.block_until_ready(dqn_forward(x, w32, v32, n_actions, k1))
    assert out32.shape == (B, n_actions)
    err32 = float(jnp.max(jnp.abs(out32 - ref)))
    assert jnp.allclose(out32, ref, atol=2e-4, rtol=2e-4), f"f32 mismatch: {err32}"

    # bf16-operand path (native MXU dtype on v5e/v6e/v7x; looser tolerance).
    wbf, vbf, k1b = pack_params(params, n_observations, n_actions, jnp.bfloat16)
    outbf = jax.block_until_ready(dqn_forward(x, wbf, vbf, n_actions, k1b))
    errbf = float(jnp.max(jnp.abs(outbf - ref)))
    assert jnp.allclose(outbf, ref, atol=5e-2, rtol=5e-2), f"bf16 mismatch: {errbf}"

    print("KERNEL_OK")
</pallas_src>

<mosaic_0001>
module attributes {stable_mosaic.version = 11 : i64} {
  func.func @dqn_kernel(%arg0: memref<256x16xf32, #tpu.memory_space<vmem>>, %arg1: memref<768x128xf32, #tpu.memory_space<vmem>>, %arg2: memref<16x128xf32, #tpu.memory_space<vmem>>, %arg3: memref<256x128xf32, #tpu.memory_space<vmem>>) attributes {dimension_semantics = [], scalar_prefetch = 0 : i64, scratch_operands = 0 : i64, tpu.core_type = #tpu.core_type<tc>} {
    %c0 = arith.constant 0 : index
    %c0_0 = arith.constant 0 : index
    %0 = vector.load %arg0[%c0, %c0_0] : memref<256x16xf32, #tpu.memory_space<vmem>>, vector<256x16xf32>
    %c0_1 = arith.constant 0 : index
    %c0_2 = arith.constant 0 : index
    %1 = vector.load %arg1[%c0_1, %c0_2] : memref<768x128xf32, #tpu.memory_space<vmem>>, vector<16x128xf32>
    %cst = arith.constant dense<0.000000e+00> : vector<256x128xf32>
    %2 = tpu.matmul %0, %1, %cst {dimension_numbers = #tpu.dot_dimension_numbers<[1], [0], [0], [1], [0, 0, 1, 1], [], []>} : vector<256x16xf32>, vector<16x128xf32>, vector<256x128xf32> -> vector<256x128xf32>
    %cst_3 = arith.constant dense<0.000000e+00> : vector<128xf32>
    %3 = vector.multi_reduction <add>, %2, %cst_3 [0] : vector<256x128xf32> to vector<128xf32>
    %4 = vector.shape_cast %3 : vector<128xf32> to vector<1x128xf32>
    %5 = arith.mulf %2, %2 : vector<256x128xf32>
    %cst_4 = arith.constant dense<0.000000e+00> : vector<128xf32>
    %6 = vector.multi_reduction <add>, %5, %cst_4 [0] : vector<256x128xf32> to vector<128xf32>
    %7 = vector.shape_cast %6 : vector<128xf32> to vector<1x128xf32>
    %cst_5 = arith.constant 3.906250e-03 : f32
    %8 = vector.broadcast %cst_5 : f32 to vector<1x128xf32>
    %9 = arith.mulf %4, %8 : vector<1x128xf32>
    %cst_6 = arith.constant 3.906250e-03 : f32
    %10 = vector.broadcast %cst_6 : f32 to vector<1x128xf32>
    %11 = arith.mulf %7, %10 : vector<1x128xf32>
    %12 = arith.mulf %9, %9 : vector<1x128xf32>
    %13 = arith.subf %11, %12 : vector<1x128xf32>
    %cst_7 = arith.constant 0.000000e+00 : f32
    %14 = vector.broadcast %cst_7 : f32 to vector<1x128xf32>
    %15 = arith.maximumf %13, %14 : vector<1x128xf32>
    %c0_8 = arith.constant 0 : index
    %c0_9 = arith.constant 0 : index
    %16 = vector.load %arg2[%c0_8, %c0_9] : memref<16x128xf32, #tpu.memory_space<vmem>>, vector<1x128xf32>
    %c1 = arith.constant 1 : index
    %c0_10 = arith.constant 0 : index
    %17 = vector.load %arg2[%c1, %c0_10] : memref<16x128xf32, #tpu.memory_space<vmem>>, vector<1x128xf32>
    %cst_11 = arith.constant 9.99999974E-6 : f32
    %18 = vector.broadcast %cst_11 : f32 to vector<1x128xf32>
    %19 = arith.addf %15, %18 : vector<1x128xf32>
    %20 = math.rsqrt %19 : vector<1x128xf32>
    %21 = arith.mulf %16, %20 : vector<1x128xf32>
    %22 = arith.mulf %9, %21 : vector<1x128xf32>
    %23 = arith.subf %17, %22 : vector<1x128xf32>
    %24 = vector.broadcast %21 : vector<1x128xf32> to vector<256x128xf32>
    %25 = arith.mulf %2, %24 : vector<256x128xf32>
    %26 = vector.broadcast %23 : vector<1x128xf32> to vector<256x128xf32>
    %27 = arith.addf %25, %26 : vector<256x128xf32>
    %cst_12 = arith.constant 0.000000e+00 : f32
    %28 = vector.broadcast %cst_12 : f32 to vector<256x128xf32>
    %29 = arith.maximumf %27, %28 : vector<256x128xf32>
    %c128 = arith.constant 128 : index
    %c0_13 = arith.constant 0 : index
    %30 = vector.load %arg1[%c128, %c0_13] : memref<768x128xf32, #tpu.memory_space<vmem>>, vector<128x128xf32>
    %cst_14 = arith.constant dense<0.000000e+00> : vector<256x128xf32>
    %31 = tpu.matmul %29, %30, %cst_14 {dimension_numbers = #tpu.dot_dimension_numbers<[1], [0], [0], [1], [0, 0, 1, 1], [], []>} : vector<256x128xf32>, vector<128x128xf32>, vector<256x128xf32> -> vector<256x128xf32>
    %cst_15 = arith.constant dense<0.000000e+00> : vector<128xf32>
    %32 = vector.multi_reduction <add>, %31, %cst_15 [0] : vector<256x128xf32> to vector<128xf32>
    %33 = vector.shape_cast %32 : vector<128xf32> to vector<1x128xf32>
    %34 = arith.mulf %31, %31 : vector<256x128xf32>
    %cst_16 = arith.constant dense<0.000000e+00> : vector<128xf32>
    %35 = vector.multi_reduction <add>, %34, %cst_16 [0] : vector<256x128xf32> to vector<128xf32>
    %36 = vector.shape_cast %35 : vector<128xf32> to vector<1x128xf32>
    %cst_17 = arith.constant 3.906250e-03 : f32
    %37 = vector.broadcast %cst_17 : f32 to vector<1x128xf32>
    %38 = arith.mulf %33, %37 : vector<1x128xf32>
    %cst_18 = arith.constant 3.906250e-03 : f32
    %39 = vector.broadcast %cst_18 : f32 to vector<1x128xf32>
    %40 = arith.mulf %36, %39 : vector<1x128xf32>
    %41 = arith.mulf %38, %38 : vector<1x128xf32>
    %42 = arith.subf %40, %41 : vector<1x128xf32>
    %cst_19 = arith.constant 0.000000e+00 : f32
    %43 = vector.broadcast %cst_19 : f32 to vector<1x128xf32>
    %44 = arith.maximumf %42, %43 : vector<1x128xf32>
    %c2 = arith.constant 2 : index
    %c0_20 = arith.constant 0 : index
    %45 = vector.load %arg2[%c2, %c0_20] : memref<16x128xf32, #tpu.memory_space<vmem>>, vector<1x128xf32>
    %c3 = arith.constant 3 : index
    %c0_21 = arith.constant 0 : index
    %46 = vector.load %arg2[%c3, %c0_21] : memref<16x128xf32, #tpu.memory_space<vmem>>, vector<1x128xf32>
    %cst_22 = arith.constant 9.99999974E-6 : f32
    %47 = vector.broadcast %cst_22 : f32 to vector<1x128xf32>
    %48 = arith.addf %44, %47 : vector<1x128xf32>
    %49 = math.rsqrt %48 : vector<1x128xf32>
    %50 = arith.mulf %45, %49 : vector<1x128xf32>
    %51 = arith.mulf %38, %50 : vector<1x128xf32>
    %52 = arith.subf %46, %51 : vector<1x128xf32>
    %53 = vector.broadcast %50 : vector<1x128xf32> to vector<256x128xf32>
    %54 = arith.mulf %31, %53 : vector<256x128xf32>
    %55 = vector.broadcast %52 : vector<1x128xf32> to vector<256x128xf32>
    %56 = arith.addf %54, %55 : vector<256x128xf32>
    %cst_23 = arith.constant 0.000000e+00 : f32
    %57 = vector.broadcast %cst_23 : f32 to vector<256x128xf32>
    %58 = arith.maximumf %56, %57 : vector<256x128xf32>
    %c256 = arith.constant 256 : index
    %c0_24 = arith.constant 0 : index
    %59 = vector.load %arg1[%c256, %c0_24] : memref<768x128xf32, #tpu.memory_space<vmem>>, vector<128x128xf32>
    %cst_25 = arith.constant dense<0.000000e+00> : vector<256x128xf32>
    %60 = tpu.matmul %58, %59, %cst_25 {dimension_numbers = #tpu.dot_dimension_numbers<[1], [0], [0], [1], [0, 0, 1, 1], [], []>} : vector<256x128xf32>, vector<128x128xf32>, vector<256x128xf32> -> vector<256x128xf32>
    %cst_26 = arith.constant dense<0.000000e+00> : vector<128xf32>
    %61 = vector.multi_reduction <add>, %60, %cst_26 [0] : vector<256x128xf32> to vector<128xf32>
    %62 = vector.shape_cast %61 : vector<128xf32> to vector<1x128xf32>
    %63 = arith.mulf %60, %60 : vector<256x128xf32>
    %cst_27 = arith.constant dense<0.000000e+00> : vector<128xf32>
    %64 = vector.multi_reduction <add>, %63, %cst_27 [0] : vector<256x128xf32> to vector<128xf32>
    %65 = vector.shape_cast %64 : vector<128xf32> to vector<1x128xf32>
    %cst_28 = arith.constant 3.906250e-03 : f32
    %66 = vector.broadcast %cst_28 : f32 to vector<1x128xf32>
    %67 = arith.mulf %62, %66 : vector<1x128xf32>
    %cst_29 = arith.constant 3.906250e-03 : f32
    %68 = vector.broadcast %cst_29 : f32 to vector<1x128xf32>
    %69 = arith.mulf %65, %68 : vector<1x128xf32>
    %70 = arith.mulf %67, %67 : vector<1x128xf32>
    %71 = arith.subf %69, %70 : vector<1x128xf32>
    %cst_30 = arith.constant 0.000000e+00 : f32
    %72 = vector.broadcast %cst_30 : f32 to vector<1x128xf32>
    %73 = arith.maximumf %71, %72 : vector<1x128xf32>
    %c4 = arith.constant 4 : index
    %c0_31 = arith.constant 0 : index
    %74 = vector.load %arg2[%c4, %c0_31] : memref<16x128xf32, #tpu.memory_space<vmem>>, vector<1x128xf32>
    %c5 = arith.constant 5 : index
    %c0_32 = arith.constant 0 : index
    %75 = vector.load %arg2[%c5, %c0_32] : memref<16x128xf32, #tpu.memory_space<vmem>>, vector<1x128xf32>
    %cst_33 = arith.constant 9.99999974E-6 : f32
    %76 = vector.broadcast %cst_33 : f32 to vector<1x128xf32>
    %77 = arith.addf %73, %76 : vector<1x128xf32>
    %78 = math.rsqrt %77 : vector<1x128xf32>
    %79 = arith.mulf %74, %78 : vector<1x128xf32>
    %80 = arith.mulf %67, %79 : vector<1x128xf32>
    %81 = arith.subf %75, %80 : vector<1x128xf32>
    %82 = vector.broadcast %79 : vector<1x128xf32> to vector<256x128xf32>
    %83 = arith.mulf %60, %82 : vector<256x128xf32>
    %84 = vector.broadcast %81 : vector<1x128xf32> to vector<256x128xf32>
    %85 = arith.addf %83, %84 : vector<256x128xf32>
    %cst_34 = arith.constant 0.000000e+00 : f32
    %86 = vector.broadcast %cst_34 : f32 to vector<256x128xf32>
    %87 = arith.maximumf %85, %86 : vector<256x128xf32>
    %c384 = arith.constant 384 : index
    %c0_35 = arith.constant 0 : index
    %88 = vector.load %arg1[%c384, %c0_35] : memref<768x128xf32, #tpu.memory_space<vmem>>, vector<128x128xf32>
    %cst_36 = arith.constant dense<0.000000e+00> : vector<256x128xf32>
    %89 = tpu.matmul %87, %88, %cst_36 {dimension_numbers = #tpu.dot_dimension_numbers<[1], [0], [0], [1], [0, 0, 1, 1], [], []>} : vector<256x128xf32>, vector<128x128xf32>, vector<256x128xf32> -> vector<256x128xf32>
    %cst_37 = arith.constant dense<0.000000e+00> : vector<128xf32>
    %90 = vector.multi_reduction <add>, %89, %cst_37 [0] : vector<256x128xf32> to vector<128xf32>
    %91 = vector.shape_cast %90 : vector<128xf32> to vector<1x128xf32>
    %92 = arith.mulf %89, %89 : vector<256x128xf32>
    %cst_38 = arith.constant dense<0.000000e+00> : vector<128xf32>
    %93 = vector.multi_reduction <add>, %92, %cst_38 [0] : vector<256x128xf32> to vector<128xf32>
    %94 = vector.shape_cast %93 : vector<128xf32> to vector<1x128xf32>
    %cst_39 = arith.constant 3.906250e-03 : f32
    %95 = vector.broadcast %cst_39 : f32 to vector<1x128xf32>
    %96 = arith.mulf %91, %95 : vector<1x128xf32>
    %cst_40 = arith.constant 3.906250e-03 : f32
    %97 = vector.broadcast %cst_40 : f32 to vector<1x128xf32>
    %98 = arith.mulf %94, %97 : vector<1x128xf32>
    %99 = arith.mulf %96, %96 : vector<1x128xf32>
    %100 = arith.subf %98, %99 : vector<1x128xf32>
    %cst_41 = arith.constant 0.000000e+00 : f32
    %101 = vector.broadcast %cst_41 : f32 to vector<1x128xf32>
    %102 = arith.maximumf %100, %101 : vector<1x128xf32>
    %c6 = arith.constant 6 : index
    %c0_42 = arith.constant 0 : index
    %103 = vector.load %arg2[%c6, %c0_42] : memref<16x128xf32, #tpu.memory_space<vmem>>, vector<1x128xf32>
    %c7 = arith.constant 7 : index
    %c0_43 = arith.constant 0 : index
    %104 = vector.load %arg2[%c7, %c0_43] : memref<16x128xf32, #tpu.memory_space<vmem>>, vector<1x128xf32>
    %cst_44 = arith.constant 9.99999974E-6 : f32
    %105 = vector.broadcast %cst_44 : f32 to vector<1x128xf32>
    %106 = arith.addf %102, %105 : vector<1x128xf32>
    %107 = math.rsqrt %106 : vector<1x128xf32>
    %108 = arith.mulf %103, %107 : vector<1x128xf32>
    %109 = arith.mulf %96, %108 : vector<1x128xf32>
    %110 = arith.subf %104, %109 : vector<1x128xf32>
    %111 = vector.broadcast %108 : vector<1x128xf32> to vector<256x128xf32>
    %112 = arith.mulf %89, %111 : vector<256x128xf32>
    %113 = vector.broadcast %110 : vector<1x128xf32> to vector<256x128xf32>
    %114 = arith.addf %112, %113 : vector<256x128xf32>
    %cst_45 = arith.constant 0.000000e+00 : f32
    %115 = vector.broadcast %cst_45 : f32 to vector<256x128xf32>
    %116 = arith.maximumf %114, %115 : vector<256x128xf32>
    %c512 = arith.constant 512 : index
    %c0_46 = arith.constant 0 : index
    %117 = vector.load %arg1[%c512, %c0_46] : memref<768x128xf32, #tpu.memory_space<vmem>>, vector<128x128xf32>
    %cst_47 = arith.constant dense<0.000000e+00> : vector<256x128xf32>
    %118 = tpu.matmul %116, %117, %cst_47 {dimension_numbers = #tpu.dot_dimension_numbers<[1], [0], [0], [1], [0, 0, 1, 1], [], []>} : vector<256x128xf32>, vector<128x128xf32>, vector<256x128xf32> -> vector<256x128xf32>
    %cst_48 = arith.constant dense<0.000000e+00> : vector<128xf32>
    %119 = vector.multi_reduction <add>, %118, %cst_48 [0] : vector<256x128xf32> to vector<128xf32>
    %120 = vector.shape_cast %119 : vector<128xf32> to vector<1x128xf32>
    %121 = arith.mulf %118, %118 : vector<256x128xf32>
    %cst_49 = arith.constant dense<0.000000e+00> : vector<128xf32>
    %122 = vector.multi_reduction <add>, %121, %cst_49 [0] : vector<256x128xf32> to vector<128xf32>
    %123 = vector.shape_cast %122 : vector<128xf32> to vector<1x128xf32>
    %cst_50 = arith.constant 3.906250e-03 : f32
    %124 = vector.broadcast %cst_50 : f32 to vector<1x128xf32>
    %125 = arith.mulf %120, %124 : vector<1x128xf32>
    %cst_51 = arith.constant 3.906250e-03 : f32
    %126 = vector.broadcast %cst_51 : f32 to vector<1x128xf32>
    %127 = arith.mulf %123, %126 : vector<1x128xf32>
    %128 = arith.mulf %125, %125 : vector<1x128xf32>
    %129 = arith.subf %127, %128 : vector<1x128xf32>
    %cst_52 = arith.constant 0.000000e+00 : f32
    %130 = vector.broadcast %cst_52 : f32 to vector<1x128xf32>
    %131 = arith.maximumf %129, %130 : vector<1x128xf32>
    %c8 = arith.constant 8 : index
    %c0_53 = arith.constant 0 : index
    %132 = vector.load %arg2[%c8, %c0_53] : memref<16x128xf32, #tpu.memory_space<vmem>>, vector<1x128xf32>
    %c9 = arith.constant 9 : index
    %c0_54 = arith.constant 0 : index
    %133 = vector.load %arg2[%c9, %c0_54] : memref<16x128xf32, #tpu.memory_space<vmem>>, vector<1x128xf32>
    %cst_55 = arith.constant 9.99999974E-6 : f32
    %134 = vector.broadcast %cst_55 : f32 to vector<1x128xf32>
    %135 = arith.addf %131, %134 : vector<1x128xf32>
    %136 = math.rsqrt %135 : vector<1x128xf32>
    %137 = arith.mulf %132, %136 : vector<1x128xf32>
    %138 = arith.mulf %125, %137 : vector<1x128xf32>
    %139 = arith.subf %133, %138 : vector<1x128xf32>
    %140 = vector.broadcast %137 : vector<1x128xf32> to vector<256x128xf32>
    %141 = arith.mulf %118, %140 : vector<256x128xf32>
    %142 = vector.broadcast %139 : vector<1x128xf32> to vector<256x128xf32>
    %143 = arith.addf %141, %142 : vector<256x128xf32>
    %cst_56 = arith.constant 0.000000e+00 : f32
    %144 = vector.broadcast %cst_56 : f32 to vector<256x128xf32>
    %145 = arith.maximumf %143, %144 : vector<256x128xf32>
    %c640 = arith.constant 640 : index
    %c0_57 = arith.constant 0 : index
    %146 = vector.load %arg1[%c640, %c0_57] : memref<768x128xf32, #tpu.memory_space<vmem>>, vector<128x128xf32>
    %c10 = arith.constant 10 : index
    %c0_58 = arith.constant 0 : index
    %147 = vector.load %arg2[%c10, %c0_58] : memref<16x128xf32, #tpu.memory_space<vmem>>, vector<1x128xf32>
    %cst_59 = arith.constant dense<0.000000e+00> : vector<256x128xf32>
    %148 = tpu.matmul %145, %146, %cst_59 {dimension_numbers = #tpu.dot_dimension_numbers<[1], [0], [0], [1], [0, 0, 1, 1], [], []>} : vector<256x128xf32>, vector<128x128xf32>, vector<256x128xf32> -> vector<256x128xf32>
    %149 = vector.broadcast %147 : vector<1x128xf32> to vector<256x128xf32>
    %150 = arith.addf %148, %149 : vector<256x128xf32>
    %c0_60 = arith.constant 0 : index
    %c0_61 = arith.constant 0 : index
    %151 = vector.load %arg3[%c0_60, %c0_61] : memref<256x128xf32, #tpu.memory_space<vmem>>, vector<256x128xf32>
    tpu.vector_store %arg3[%c0_60, %c0_61], %150 {strides = array<i32>} : memref<256x128xf32, #tpu.memory_space<vmem>>, vector<256x128xf32>,
    return
  }
}

</mosaic_0001>

<llo_original>
// kernel: tpu_custom_call.1
$region0: #{tpu_custom_call.1}
  #allocation0 [shape = 'u32[]', space=smem, size = 0x4, offset = 0x4, fixed_abs, tag = 'smem constant byte address 0x4 - core index']
  #allocation1 [shape = 'u32[72,128]{1,0:T(1,128)}', space=vmem, size = 0x9000, scoped, tag = 'internal scratch']
  %s0 = inlined_call_operand.vmem [shape: f32[256,16], index: 0, kind: input, shape index: {}]
  %s1 = inlined_call_operand.hbm [shape: f32[768,128], index: 1, kind: input, shape index: {}]
  %s2 = inlined_call_operand.vmem [shape: f32[16,128], index: 2, kind: input, shape index: {}]
  %s3 = inlined_call_operand.hbm [shape: f32[256,128], index: 3, kind: output, shape index: {}]
  %s4 = sld [smem:[#allocation0]]
  $region26: #{tpu_custom_call.1} parent=0
    _
  %s6 = ssub.s32 1, %s4
  %s7 = scalar_select 0, %s6, %s4
  $region1: #{tpu_custom_call.1} parent=0
    #allocation2 [shape = 'u8[393216]{0}', space=vmem, size = 0x60000, scoped, tag = 'input window, operand 1, single buffered']
    #allocation3 [shape = 's32[1]{0}', space=sflag, size = 0x4, scoped, tag = 'scoped memory for tpu_custom_call.1']
    #allocation4 [shape = 's32[1]{0}', space=sflag, size = 0x4, scoped, tag = 'scoped memory for tpu_custom_call.1']
    #allocation5 [shape = 'u8[131072]{0}', space=vmem, size = 0x20000, scoped, tag = 'output window, operand 0, single buffered']
    %8 = vsyncpa [#allocation3], 0
    %9 = vsyncpa [#allocation4], 0
    // Predicated region
    $region2: #{tpu_custom_call.1} parent=1 // pred_check
      _
    $region3: #{tpu_custom_call.1} parent=1 // pred_check_branch
      %11 = sbr.rel (0) target = $region5
    $region4: #{tpu_custom_call.1} parent=1 // pred_region
      _
    $region5: #{tpu_custom_call.1} parent=1 // pred_fallthru
      _
    // Predicated region
    $region6: #{tpu_custom_call.1} parent=1 // pred_check
      _
    $region7: #{tpu_custom_call.1} parent=1 // pred_check_branch
      %13 = sbr.rel (0) target = $region9
    $region8: #{tpu_custom_call.1} parent=1 // pred_region
      %15 = vsyncadd [#allocation3], 0
      %s16 = sshll.u32 %s1, 4
      %s17 = int_to_ptr.hbm [resolvable:$true] %s16
      %s18 = sshll.u32 [#allocation2], 4
      %s19 = int_to_ptr.vmem [resolvable:$true] %s18
      %24 = dma.hbm_to_vmem [thread:$0]  %s17, 12288, %s19, [#allocation3], 128, 128, 8
    $region9: #{tpu_custom_call.1} parent=1 // pred_fallthru
      _
    // Predicated region
    $region10: #{tpu_custom_call.1} parent=1 // pred_check
      _
    $region11: #{tpu_custom_call.1} parent=1 // pred_check_branch
      %26 = sbr.rel (0) target = $region13
    $region12: #{tpu_custom_call.1} parent=1 // pred_region
      _
    $region13: #{tpu_custom_call.1} parent=1 // pred_fallthru
      _
    // Predicated region
    $region14: #{tpu_custom_call.1} parent=1 // pred_check
      _
    $region15: #{tpu_custom_call.1} parent=1 // pred_check_branch
      %28 = sbr.rel (0) target = $region17
    $region16: #{tpu_custom_call.1} parent=1 // pred_region
      %30 = dma.done [#allocation3], 12288
    $region17: #{tpu_custom_call.1} parent=1 // pred_fallthru
      _
    %v31 = vld [vmem:[%s0] sm:$0xff]
    %v32 = vld [vmem:[%s0 + $0x8] sm:$0xff]
    %v33 = vld [vmem:[%s0 + $0x10] sm:$0xff]
    %v34 = vld [vmem:[%s0 + $0x18] sm:$0xff]
    %v35 = vld [vmem:[%s0 + $0x20] sm:$0xff]
    %v36 = vld [vmem:[%s0 + $0x28] sm:$0xff]
    %v37 = vld [vmem:[%s0 + $0x30] sm:$0xff]
    %v38 = vld [vmem:[%s0 + $0x38] sm:$0xff]
    %v39 = vld [vmem:[%s0 + $0x40] sm:$0xff]
    %v40 = vld [vmem:[%s0 + $0x48] sm:$0xff]
    %v41 = vld [vmem:[%s0 + $0x50] sm:$0xff]
    %v42 = vld [vmem:[%s0 + $0x58] sm:$0xff]
    %v43 = vld [vmem:[%s0 + $0x60] sm:$0xff]
    %v44 = vld [vmem:[%s0 + $0x68] sm:$0xff]
    %v45 = vld [vmem:[%s0 + $0x70] sm:$0xff]
    %v46 = vld [vmem:[%s0 + $0x78] sm:$0xff]
    %v47 = vld [vmem:[%s0 + $0x80] sm:$0xff]
    %v48 = vld [vmem:[%s0 + $0x88] sm:$0xff]
    %v49 = vld [vmem:[%s0 + $0x90] sm:$0xff]
    %v50 = vld [vmem:[%s0 + $0x98] sm:$0xff]
    %v51 = vld [vmem:[%s0 + $0xa0] sm:$0xff]
    %v52 = vld [vmem:[%s0 + $0xa8] sm:$0xff]
    %v53 = vld [vmem:[%s0 + $0xb0] sm:$0xff]
    %v54 = vld [vmem:[%s0 + $0xb8] sm:$0xff]
    %v55 = vld [vmem:[%s0 + $0xc0] sm:$0xff]
    %v56 = vld [vmem:[%s0 + $0xc8] sm:$0xff]
    %v57 = vld [vmem:[%s0 + $0xd0] sm:$0xff]
    %v58 = vld [vmem:[%s0 + $0xd8] sm:$0xff]
    %v59 = vld [vmem:[%s0 + $0xe0] sm:$0xff]
    %v60 = vld [vmem:[%s0 + $0xe8] sm:$0xff]
    %v61 = vld [vmem:[%s0 + $0xf0] sm:$0xff]
    %v62 = vld [vmem:[%s0 + $0xf8] sm:$0xff]
    %v63 = vld [vmem:[#allocation2] sm:$0xff]
    %v64 = vld [vmem:[#allocation2 + $0x8] sm:$0xff]
    %vm65 = vcmask 130048
    %v67 = vsel %vm65, %v31, 0
    %v70 = vsel %vm65, %v32, 0
    %v73 = vsel %vm65, %v33, 0
    %v76 = vsel %vm65, %v34, 0
    %v79 = vsel %vm65, %v35, 0
    %v82 = vsel %vm65, %v36, 0
    %v85 = vsel %vm65, %v37, 0
    %v88 = vsel %vm65, %v38, 0
    %v91 = vsel %vm65, %v39, 0
    %v94 = vsel %vm65, %v40, 0
    %v97 = vsel %vm65, %v41, 0
    %v100 = vsel %vm65, %v42, 0
    %v103 = vsel %vm65, %v43, 0
    %v106 = vsel %vm65, %v44, 0
    %v109 = vsel %vm65, %v45, 0
    %v112 = vsel %vm65, %v46, 0
    %v115 = vsel %vm65, %v47, 0
    %v118 = vsel %vm65, %v48, 0
    %v121 = vsel %vm65, %v49, 0
    %v124 = vsel %vm65, %v50, 0
    %v127 = vsel %vm65, %v51, 0
    %v130 = vsel %vm65, %v52, 0
    %v133 = vsel %vm65, %v53, 0
    %v136 = vsel %vm65, %v54, 0
    %v139 = vsel %vm65, %v55, 0
    %v142 = vsel %vm65, %v56, 0
    %v145 = vsel %vm65, %v57, 0
    %v148 = vsel %vm65, %v58, 0
    %v151 = vsel %vm65, %v59, 0
    %v154 = vsel %vm65, %v60, 0
    %v157 = vsel %vm65, %v61, 0
    %v160 = vsel %vm65, %v62, 0
    %162 = vmatpush.msra.mxu0 0.0
    %163 = vmatpush.msra.mxu0 0.0
    %164 = vmatpush.msra.mxu0 0.0
    %165 = vmatpush.msra.mxu0 0.0
    %166 = vmatpush.msra.mxu0 0.0
    %167 = vmatpush.msra.mxu0 0.0
    %168 = vmatpush.msra.mxu0 0.0
    %169 = vmatpush.msra.mxu0 0.0
    %170 = vmatpush.msra.mxu0 0.0
    %171 = vmatpush.msra.mxu0 0.0
    %172 = vmatpush.msra.mxu0 0.0
    %173 = vmatpush.msra.mxu0 0.0
    %174 = vmatpush.msra.mxu0 0.0
    %175 = vmatpush.msra.mxu0 0.0
    %176 = vmatpush.msra.mxu0 %v64
    %177 = vmatpush.msra.mxu0 %v63
    %178 = vmatmul.f32.gmra.mxu0 %v67
    %v179 = vpop.f32.mrf.mxu0
    %v180 = vadd.f32 0.0, %v179
    %181 = vmatmul.f32.gmra.mxu0 %v70
    %v182 = vpop.f32.mrf.mxu0
    %v183 = vadd.f32 0.0, %v182
    %184 = vmatmul.f32.gmra.mxu0 %v73
    %v185 = vpop.f32.mrf.mxu0
    %v186 = vadd.f32 0.0, %v185
    %187 = vmatmul.f32.gmra.mxu0 %v76
    %v188 = vpop.f32.mrf.mxu0
    %v189 = vadd.f32 0.0, %v188
    %190 = vmatmul.f32.gmra.mxu0 %v79
    %v191 = vpop.f32.mrf.mxu0
    %v192 = vadd.f32 0.0, %v191
    %193 = vmatmul.f32.gmra.mxu0 %v82
    %v194 = vpop.f32.mrf.mxu0
    %v195 = vadd.f32 0.0, %v194
    %196 = vmatmul.f32.gmra.mxu0 %v85
    %v197 = vpop.f32.mrf.mxu0
    %v198 = vadd.f32 0.0, %v197
    %199 = vmatmul.f32.gmra.mxu0 %v88
    %v200 = vpop.f32.mrf.mxu0
    %v201 = vadd.f32 0.0, %v200
    %202 = vmatmul.f32.gmra.mxu0 %v91
    %v203 = vpop.f32.mrf.mxu0
    %v204 = vadd.f32 0.0, %v203
    %205 = vmatmul.f32.gmra.mxu0 %v94
    %v206 = vpop.f32.mrf.mxu0
    %v207 = vadd.f32 0.0, %v206
    %208 = vmatmul.f32.gmra.mxu0 %v97
    %v209 = vpop.f32.mrf.mxu0
    %v210 = vadd.f32 0.0, %v209
    %211 = vmatmul.f32.gmra.mxu0 %v100
    %v212 = vpop.f32.mrf.mxu0
    %v213 = vadd.f32 0.0, %v212
    %214 = vmatmul.f32.gmra.mxu0 %v103
    %v215 = vpop.f32.mrf.mxu0
    %v216 = vadd.f32 0.0, %v215
    %217 = vmatmul.f32.gmra.mxu0 %v106
    %v218 = vpop.f32.mrf.mxu0
    %v219 = vadd.f32 0.0, %v218
    %220 = vmatmul.f32.gmra.mxu0 %v109
    %v221 = vpop.f32.mrf.mxu0
    %v222 = vadd.f32 0.0, %v221
    %223 = vmatmul.f32.gmra.mxu0 %v112
    %v224 = vpop.f32.mrf.mxu0
    %v225 = vadd.f32 0.0, %v224
    %226 = vmatmul.f32.gmra.mxu0 %v115
    %v227 = vpop.f32.mrf.mxu0
    %v228 = vadd.f32 0.0, %v227
    %229 = vmatmul.f32.gmra.mxu0 %v118
    %v230 = vpop.f32.mrf.mxu0
    %v231 = vadd.f32 0.0, %v230
    %232 = vmatmul.f32.gmra.mxu0 %v121
    %v233 = vpop.f32.mrf.mxu0
    %v234 = vadd.f32 0.0, %v233
    %235 = vmatmul.f32.gmra.mxu0 %v124
    %v236 = vpop.f32.mrf.mxu0
    %v237 = vadd.f32 0.0, %v236
    %238 = vmatmul.f32.gmra.mxu0 %v127
    %v239 = vpop.f32.mrf.mxu0
    %v240 = vadd.f32 0.0, %v239
    %241 = vmatmul.f32.gmra.mxu0 %v130
    %v242 = vpop.f32.mrf.mxu0
    %v243 = vadd.f32 0.0, %v242
    %244 = vmatmul.f32.gmra.mxu0 %v133
    %v245 = vpop.f32.mrf.mxu0
    %v246 = vadd.f32 0.0, %v245
    %247 = vmatmul.f32.gmra.mxu0 %v136
    %v248 = vpop.f32.mrf.mxu0
    %v249 = vadd.f32 0.0, %v248
    %250 = vmatmul.f32.gmra.mxu0 %v139
    %v251 = vpop.f32.mrf.mxu0
    %v252 = vadd.f32 0.0, %v251
    %253 = vmatmul.f32.gmra.mxu0 %v142
    %v254 = vpop.f32.mrf.mxu0
    %v255 = vadd.f32 0.0, %v254
    %256 = vmatmul.f32.gmra.mxu0 %v145
    %v257 = vpop.f32.mrf.mxu0
    %v258 = vadd.f32 0.0, %v257
    %259 = vmatmul.f32.gmra.mxu0 %v148
    %v260 = vpop.f32.mrf.mxu0
    %v261 = vadd.f32 0.0, %v260
    %262 = vmatmul.f32.gmra.mxu0 %v151
    %v263 = vpop.f32.mrf.mxu0
    %v264 = vadd.f32 0.0, %v263
    %265 = vmatmul.f32.gmra.mxu0 %v154
    %v266 = vpop.f32.mrf.mxu0
    %v267 = vadd.f32 0.0, %v266
    %268 = vmatmul.f32.gmra.mxu0 %v157
    %v269 = vpop.f32.mrf.mxu0
    %v270 = vadd.f32 0.0, %v269
    %271 = vmatmul.f32.gmra.mxu0 %v160
    %v272 = vpop.f32.mrf.mxu0
    %v273 = vadd.f32 0.0, %v272
    %274 = vdwg.mxu0
    %v275 = vadd.f32 %v180, %v183
    %v276 = vadd.f32 %v275, %v186
    %v277 = vadd.f32 %v276, %v189
    %v278 = vadd.f32 %v277, %v192
    %v279 = vadd.f32 %v278, %v195
    %v280 = vadd.f32 %v279, %v198
    %v281 = vadd.f32 %v280, %v201
    %v282 = vadd.f32 %v281, %v204
    %v283 = vadd.f32 %v282, %v207
    %v284 = vadd.f32 %v283, %v210
    %v285 = vadd.f32 %v284, %v213
    %v286 = vadd.f32 %v285, %v216
    %v287 = vadd.f32 %v286, %v219
    %v288 = vadd.f32 %v287, %v222
    %v289 = vadd.f32 %v288, %v225
    %v290 = vadd.f32 %v289, %v228
    %v291 = vadd.f32 %v290, %v231
    %v292 = vadd.f32 %v291, %v234
    %v293 = vadd.f32 %v292, %v237
    %v294 = vadd.f32 %v293, %v240
    %v295 = vadd.f32 %v294, %v243
    %v296 = vadd.f32 %v295, %v246
    %v297 = vadd.f32 %v296, %v249
    %v298 = vadd.f32 %v297, %v252
    %v299 = vadd.f32 %v298, %v255
    %v300 = vadd.f32 %v299, %v258
    %v301 = vadd.f32 %v300, %v261
    %v302 = vadd.f32 %v301, %v264
    %v303 = vadd.f32 %v302, %v267
    %v304 = vadd.f32 %v303, %v270
    %v305 = vadd.f32 %v304, %v273
    %v306 = vrot.slane %v305, 4
    %v307 = vadd.f32 %v305, %v306
    %v308 = vrot.slane %v307, 2
    %v309 = vadd.f32 %v307, %v308
    %v310 = vrot.slane %v309, 1
    %v311 = vadd.f32 %v309, %v310
    %v312 = vmul.f32 %v180, %v180
    %v313 = vmul.f32 %v183, %v183
    %v314 = vmul.f32 %v186, %v186
    %v315 = vmul.f32 %v189, %v189
    %v316 = vmul.f32 %v192, %v192
    %v317 = vmul.f32 %v195, %v195
    %v318 = vmul.f32 %v198, %v198
    %v319 = vmul.f32 %v201, %v201
    %v320 = vmul.f32 %v204, %v204
    %v321 = vmul.f32 %v207, %v207
    %v322 = vmul.f32 %v210, %v210
    %v323 = vmul.f32 %v213, %v213
    %v324 = vmul.f32 %v216, %v216
    %v325 = vmul.f32 %v219, %v219
    %v326 = vmul.f32 %v222, %v222
    %v327 = vmul.f32 %v225, %v225
    %v328 = vmul.f32 %v228, %v228
    %v329 = vmul.f32 %v231, %v231
    %v330 = vmul.f32 %v234, %v234
    %v331 = vmul.f32 %v237, %v237
    %v332 = vmul.f32 %v240, %v240
    %v333 = vmul.f32 %v243, %v243
    %v334 = vmul.f32 %v246, %v246
    %v335 = vmul.f32 %v249, %v249
    %v336 = vmul.f32 %v252, %v252
    %v337 = vmul.f32 %v255, %v255
    %v338 = vmul.f32 %v258, %v258
    %v339 = vmul.f32 %v261, %v261
    %v340 = vmul.f32 %v264, %v264
    %v341 = vmul.f32 %v267, %v267
    %v342 = vmul.f32 %v270, %v270
    %v343 = vmul.f32 %v273, %v273
    %v344 = vadd.f32 %v312, %v313
    %v345 = vadd.f32 %v344, %v314
    %v346 = vadd.f32 %v345, %v315
    %v347 = vadd.f32 %v346, %v316
    %v348 = vadd.f32 %v347, %v317
    %v349 = vadd.f32 %v348, %v318
    %v350 = vadd.f32 %v349, %v319
    %v351 = vadd.f32 %v350, %v320
    %v352 = vadd.f32 %v351, %v321
    %v353 = vadd.f32 %v352, %v322
    %v354 = vadd.f32 %v353, %v323
    %v355 = vadd.f32 %v354, %v324
    %v356 = vadd.f32 %v355, %v325
    %v357 = vadd.f32 %v356, %v326
    %v358 = vadd.f32 %v357, %v327
    %v359 = vadd.f32 %v358, %v328
    %v360 = vadd.f32 %v359, %v329
    %v361 = vadd.f32 %v360, %v330
    %v362 = vadd.f32 %v361, %v331
    %v363 = vadd.f32 %v362, %v332
    %v364 = vadd.f32 %v363, %v333
    %v365 = vadd.f32 %v364, %v334
    %v366 = vadd.f32 %v365, %v335
    %v367 = vadd.f32 %v366, %v336
    %v368 = vadd.f32 %v367, %v337
    %v369 = vadd.f32 %v368, %v338
    %v370 = vadd.f32 %v369, %v339
    %v371 = vadd.f32 %v370, %v340
    %v372 = vadd.f32 %v371, %v341
    %v373 = vadd.f32 %v372, %v342
    %v374 = vadd.f32 %v373, %v343
    %v375 = vrot.slane %v374, 4
    %v376 = vadd.f32 %v374, %v375
    %v377 = vrot.slane %v376, 2
    %v378 = vadd.f32 %v376, %v377
    %v379 = vrot.slane %v378, 1
    %v380 = vadd.f32 %v378, %v379
    %v381 = vmul.f32 %v311, 0.00390625
    %v382 = vmul.f32 %v380, 0.00390625
    %v383 = vmul.f32 %v381, %v381
    %v384 = vsub.f32 %v382, %v383
    %v385 = vmax.f32 %v384, 0.0
    %v386 = vld [vmem:[%s2] sm:$0x1]
    %v387 = vld [vmem:[%s2 + $0x1] sm:$0x1]
    %v388 = vadd.f32 %v385, 1e-05
    %v389 = vrsqrt.pop %v388
    %v390 = vmul.f32 %v389, %v388
    %v391 = vmul.f32 %v390, %v389
    %v392 = vmul.f32 0.5, %v391
    %v393 = vsub.f32 1.5, %v392
    %v394 = vmul.f32 %v389, %v393
    %vm395 = vweird.f32 %v388
    %vm396 = vweird.f32 %v389
    %vm397 = vmor %vm395, %vm396
    %v398 = vsel %vm397, %v389, %v394
    %v399 = vmul.f32 %v386, %v398
    %v400 = vmul.f32 %v381, %v399
    %v401 = vsub.f32 %v387, %v400
    %v402 = vperm.slane %v399, 0
    %v403 = vmul.f32 %v180, %v402
    %v404 = vmul.f32 %v183, %v402
    %v405 = vmul.f32 %v186, %v402
    %v406 = vmul.f32 %v189, %v402
    %v407 = vmul.f32 %v192, %v402
    %v408 = vmul.f32 %v195, %v402
    %v409 = vmul.f32 %v198, %v402
    %v410 = vmul.f32 %v201, %v402
    %v411 = vmul.f32 %v204, %v402
    %v412 = vmul.f32 %v207, %v402
    %v413 = vmul.f32 %v210, %v402
    %v414 = vmul.f32 %v213, %v402
    %v415 = vmul.f32 %v216, %v402
    %v416 = vmul.f32 %v219, %v402
    %v417 = vmul.f32 %v222, %v402
    %v418 = vmul.f32 %v225, %v402
    %v419 = vmul.f32 %v228, %v402
    %v420 = vmul.f32 %v231, %v402
    %v421 = vmul.f32 %v234, %v402
    %v422 = vmul.f32 %v237, %v402
    %v423 = vmul.f32 %v240, %v402
    %v424 = vmul.f32 %v243, %v402
    %v425 = vmul.f32 %v246, %v402
    %v426 = vmul.f32 %v249, %v402
    %v427 = vmul.f32 %v252, %v402
    %v428 = vmul.f32 %v255, %v402
    %v429 = vmul.f32 %v258, %v402
    %v430 = vmul.f32 %v261, %v402
    %v431 = vmul.f32 %v264, %v402
    %v432 = vmul.f32 %v267, %v402
    %v433 = vmul.f32 %v270, %v402
    %v434 = vmul.f32 %v273, %v402
    %v435 = vperm.slane %v401, 0
    %v436 = vadd.f32 %v403, %v435
    %v437 = vadd.f32 %v404, %v435
    %v438 = vadd.f32 %v405, %v435
    %v439 = vadd.f32 %v406, %v435
    %v440 = vadd.f32 %v407, %v435
    %v441 = vadd.f32 %v408, %v435
    %v442 = vadd.f32 %v409, %v435
    %v443 = vadd.f32 %v410, %v435
    %v444 = vadd.f32 %v411, %v435
    %v445 = vadd.f32 %v412, %v435
    %v446 = vadd.f32 %v413, %v435
    %v447 = vadd.f32 %v414, %v435
    %v448 = vadd.f32 %v415, %v435
    %v449 = vadd.f32 %v416, %v435
    %v450 = vadd.f32 %v417, %v435
    %v451 = vadd.f32 %v418, %v435
    %v452 = vadd.f32 %v419, %v435
    %v453 = vadd.f32 %v420, %v435
    %v454 = vadd.f32 %v421, %v435
    %v455 = vadd.f32 %v422, %v435
    %v456 = vadd.f32 %v423, %v435
    %v457 = vadd.f32 %v424, %v435
    %v458 = vadd.f32 %v425, %v435
    %v459 = vadd.f32 %v426, %v435
    %v460 = vadd.f32 %v427, %v435
    %v461 = vadd.f32 %v428, %v435
    %v462 = vadd.f32 %v429, %v435
    %v463 = vadd.f32 %v430, %v435
    %v464 = vadd.f32 %v431, %v435
    %v465 = vadd.f32 %v432, %v435
    %v466 = vadd.f32 %v433, %v435
    %v467 = vadd.f32 %v434, %v435
    %v468 = vmax.f32 %v436, 0.0
    %v469 = vmax.f32 %v437, 0.0
    %v470 = vmax.f32 %v438, 0.0
    %v471 = vmax.f32 %v439, 0.0
    %v472 = vmax.f32 %v440, 0.0
    %v473 = vmax.f32 %v441, 0.0
    %v474 = vmax.f32 %v442, 0.0
    %v475 = vmax.f32 %v443, 0.0
    %v476 = vmax.f32 %v444, 0.0
    %v477 = vmax.f32 %v445, 0.0
    %v478 = vmax.f32 %v446, 0.0
    %v479 = vmax.f32 %v447, 0.0
    %v480 = vmax.f32 %v448, 0.0
    %v481 = vmax.f32 %v449, 0.0
    %v482 = vmax.f32 %v450, 0.0
    %v483 = vmax.f32 %v451, 0.0
    %v484 = vmax.f32 %v452, 0.0
    %v485 = vmax.f32 %v453, 0.0
    %v486 = vmax.f32 %v454, 0.0
    %v487 = vmax.f32 %v455, 0.0
    %v488 = vmax.f32 %v456, 0.0
    %v489 = vmax.f32 %v457, 0.0
    %v490 = vmax.f32 %v458, 0.0
    %v491 = vmax.f32 %v459, 0.0
    %v492 = vmax.f32 %v460, 0.0
    %v493 = vmax.f32 %v461, 0.0
    %v494 = vmax.f32 %v462, 0.0
    %v495 = vmax.f32 %v463, 0.0
    %v496 = vmax.f32 %v464, 0.0
    %v497 = vmax.f32 %v465, 0.0
    %v498 = vmax.f32 %v466, 0.0
    %v499 = vmax.f32 %v467, 0.0
    %v500 = vld [vmem:[#allocation2 + $0x80] sm:$0xff]
    %v501 = vld [vmem:[#allocation2 + $0x88] sm:$0xff]
    %v502 = vld [vmem:[#allocation2 + $0x90] sm:$0xff]
    %v503 = vld [vmem:[#allocation2 + $0x98] sm:$0xff]
    %v504 = vld [vmem:[#allocation2 + $0xa0] sm:$0xff]
    %v505 = vld [vmem:[#allocation2 + $0xa8] sm:$0xff]
    %v506 = vld [vmem:[#allocation2 + $0xb0] sm:$0xff]
    %v507 = vld [vmem:[#allocation2 + $0xb8] sm:$0xff]
    %v508 = vld [vmem:[#allocation2 + $0xc0] sm:$0xff]
    %v509 = vld [vmem:[#allocation2 + $0xc8] sm:$0xff]
    %v510 = vld [vmem:[#allocation2 + $0xd0] sm:$0xff]
    %v511 = vld [vmem:[#allocation2 + $0xd8] sm:$0xff]
    %v512 = vld [vmem:[#allocation2 + $0xe0] sm:$0xff]
    %v513 = vld [vmem:[#allocation2 + $0xe8] sm:$0xff]
    %v514 = vld [vmem:[#allocation2 + $0xf0] sm:$0xff]
    %v515 = vld [vmem:[#allocation2 + $0xf8] sm:$0xff]
    %516 = vmatpush.msra.mxu0 %v515
    %517 = vmatpush.msra.mxu0 %v514
    %518 = vmatpush.msra.mxu0 %v513
    %519 = vmatpush.msra.mxu0 %v512
    %520 = vmatpush.msra.mxu0 %v511
    %521 = vmatpush.msra.mxu0 %v510
    %522 = vmatpush.msra.mxu0 %v509
    %523 = vmatpush.msra.mxu0 %v508
    %524 = vmatpush.msra.mxu0 %v507
    %525 = vmatpush.msra.mxu0 %v506
    %526 = vmatpush.msra.mxu0 %v505
    %527 = vmatpush.msra.mxu0 %v504
    %528 = vmatpush.msra.mxu0 %v503
    %529 = vmatpush.msra.mxu0 %v502
    %530 = vmatpush.msra.mxu0 %v501
    %531 = vmatpush.msra.mxu0 %v500
    %532 = vmatmul.f32.gmra.mxu0 %v468
    %v533 = vpop.f32.mrf.mxu0
    %v534 = vadd.f32 0.0, %v533
    %535 = vmatmul.f32.gmra.mxu0 %v469
    %v536 = vpop.f32.mrf.mxu0
    %v537 = vadd.f32 0.0, %v536
    %538 = vmatmul.f32.gmra.mxu0 %v470
    %v539 = vpop.f32.mrf.mxu0
    %v540 = vadd.f32 0.0, %v539
    %541 = vmatmul.f32.gmra.mxu0 %v471
    %v542 = vpop.f32.mrf.mxu0
    %v543 = vadd.f32 0.0, %v542
    %544 = vmatmul.f32.gmra.mxu0 %v472
    %v545 = vpop.f32.mrf.mxu0
    %v546 = vadd.f32 0.0, %v545
    %547 = vmatmul.f32.gmra.mxu0 %v473
    %v548 = vpop.f32.mrf.mxu0
    %v549 = vadd.f32 0.0, %v548
    %550 = vmatmul.f32.gmra.mxu0 %v474
    %v551 = vpop.f32.mrf.mxu0
    %v552 = vadd.f32 0.0, %v551
    %553 = vmatmul.f32.gmra.mxu0 %v475
    %v554 = vpop.f32.mrf.mxu0
    %v555 = vadd.f32 0.0, %v554
    %556 = vmatmul.f32.gmra.mxu0 %v476
    %v557 = vpop.f32.mrf.mxu0
    %v558 = vadd.f32 0.0, %v557
    %559 = vmatmul.f32.gmra.mxu0 %v477
    %v560 = vpop.f32.mrf.mxu0
    %v561 = vadd.f32 0.0, %v560
    %562 = vmatmul.f32.gmra.mxu0 %v478
    %v563 = vpop.f32.mrf.mxu0
    %v564 = vadd.f32 0.0, %v563
    %565 = vmatmul.f32.gmra.mxu0 %v479
    %v566 = vpop.f32.mrf.mxu0
    %v567 = vadd.f32 0.0, %v566
    %568 = vmatmul.f32.gmra.mxu0 %v480
    %v569 = vpop.f32.mrf.mxu0
    %v570 = vadd.f32 0.0, %v569
    %571 = vmatmul.f32.gmra.mxu0 %v481
    %v572 = vpop.f32.mrf.mxu0
    %v573 = vadd.f32 0.0, %v572
    %574 = vmatmul.f32.gmra.mxu0 %v482
    %v575 = vpop.f32.mrf.mxu0
    %v576 = vadd.f32 0.0, %v575
    %577 = vmatmul.f32.gmra.mxu0 %v483
    %v578 = vpop.f32.mrf.mxu0
    %v579 = vadd.f32 0.0, %v578
    %580 = vmatmul.f32.gmra.mxu0 %v484
    %v581 = vpop.f32.mrf.mxu0
    %v582 = vadd.f32 0.0, %v581
    %583 = vmatmul.f32.gmra.mxu0 %v485
    %v584 = vpop.f32.mrf.mxu0
    %v585 = vadd.f32 0.0, %v584
    %586 = vmatmul.f32.gmra.mxu0 %v486
    %v587 = vpop.f32.mrf.mxu0
    %v588 = vadd.f32 0.0, %v587
    %589 = vmatmul.f32.gmra.mxu0 %v487
    %v590 = vpop.f32.mrf.mxu0
    %v591 = vadd.f32 0.0, %v590
    %592 = vmatmul.f32.gmra.mxu0 %v488
    %v593 = vpop.f32.mrf.mxu0
    %v594 = vadd.f32 0.0, %v593
    %595 = vmatmul.f32.gmra.mxu0 %v489
    %v596 = vpop.f32.mrf.mxu0
    %v597 = vadd.f32 0.0, %v596
    %598 = vmatmul.f32.gmra.mxu0 %v490
    %v599 = vpop.f32.mrf.mxu0
    %v600 = vadd.f32 0.0, %v599
    %601 = vmatmul.f32.gmra.mxu0 %v491
    %v602 = vpop.f32.mrf.mxu0
    %v603 = vadd.f32 0.0, %v602
    %604 = vmatmul.f32.gmra.mxu0 %v492
    %v605 = vpop.f32.mrf.mxu0
    %v606 = vadd.f32 0.0, %v605
    %607 = vmatmul.f32.gmra.mxu0 %v493
    %v608 = vpop.f32.mrf.mxu0
    %v609 = vadd.f32 0.0, %v608
    %610 = vmatmul.f32.gmra.mxu0 %v494
    %v611 = vpop.f32.mrf.mxu0
    %v612 = vadd.f32 0.0, %v611
    %613 = vmatmul.f32.gmra.mxu0 %v495
    %v614 = vpop.f32.mrf.mxu0
    %v615 = vadd.f32 0.0, %v614
    %616 = vmatmul.f32.gmra.mxu0 %v496
    %v617 = vpop.f32.mrf.mxu0
    %v618 = vadd.f32 0.0, %v617
    %619 = vmatmul.f32.gmra.mxu0 %v497
    %v620 = vpop.f32.mrf.mxu0
    %v621 = vadd.f32 0.0, %v620
    %622 = vmatmul.f32.gmra.mxu0 %v498
    %v623 = vpop.f32.mrf.mxu0
    %v624 = vadd.f32 0.0, %v623
    %625 = vmatmul.f32.gmra.mxu0 %v499
    %v626 = vpop.f32.mrf.mxu0
    %v627 = vadd.f32 0.0, %v626
    %628 = vdwg.mxu0
    %v629 = vadd.f32 %v534, %v537
    %v630 = vadd.f32 %v629, %v540
    %v631 = vadd.f32 %v630, %v543
    %v632 = vadd.f32 %v631, %v546
    %v633 = vadd.f32 %v632, %v549
    %v634 = vadd.f32 %v633, %v552
    %v635 = vadd.f32 %v634, %v555
    %v636 = vadd.f32 %v635, %v558
    %v637 = vadd.f32 %v636, %v561
    %v638 = vadd.f32 %v637, %v564
    %v639 = vadd.f32 %v638, %v567
    %v640 = vadd.f32 %v639, %v570
    %v641 = vadd.f32 %v640, %v573
    %v642 = vadd.f32 %v641, %v576
    %v643 = vadd.f32 %v642, %v579
    %v644 = vadd.f32 %v643, %v582
    %v645 = vadd.f32 %v644, %v585
    %v646 = vadd.f32 %v645, %v588
    %v647 = vadd.f32 %v646, %v591
    %v648 = vadd.f32 %v647, %v594
    %v649 = vadd.f32 %v648, %v597
    %v650 = vadd.f32 %v649, %v600
    %v651 = vadd.f32 %v650, %v603
    %v652 = vadd.f32 %v651, %v606
    %v653 = vadd.f32 %v652, %v609
    %v654 = vadd.f32 %v653, %v612
    %v655 = vadd.f32 %v654, %v615
    %v656 = vadd.f32 %v655, %v618
    %v657 = vadd.f32 %v656, %v621
    %v658 = vadd.f32 %v657, %v624
    %v659 = vadd.f32 %v658, %v627
    %v660 = vrot.slane %v659, 4
    %v661 = vadd.f32 %v659, %v660
    %v662 = vrot.slane %v661, 2
    %v663 = vadd.f32 %v661, %v662
    %v664 = vrot.slane %v663, 1
    %v665 = vadd.f32 %v663, %v664
    %v666 = vmul.f32 %v534, %v534
    %v667 = vmul.f32 %v537, %v537
    %v668 = vmul.f32 %v540, %v540
    %v669 = vmul.f32 %v543, %v543
    %v670 = vmul.f32 %v546, %v546
    %v671 = vmul.f32 %v549, %v549
    %v672 = vmul.f32 %v552, %v552
    %v673 = vmul.f32 %v555, %v555
    %v674 = vmul.f32 %v558, %v558
    %v675 = vmul.f32 %v561, %v561
    %v676 = vmul.f32 %v564, %v564
    %v677 = vmul.f32 %v567, %v567
    %v678 = vmul.f32 %v570, %v570
    %v679 = vmul.f32 %v573, %v573
    %v680 = vmul.f32 %v576, %v576
    %v681 = vmul.f32 %v579, %v579
    %v682 = vmul.f32 %v582, %v582
    %v683 = vmul.f32 %v585, %v585
    %v684 = vmul.f32 %v588, %v588
    %v685 = vmul.f32 %v591, %v591
    %v686 = vmul.f32 %v594, %v594
    %v687 = vmul.f32 %v597, %v597
    %v688 = vmul.f32 %v600, %v600
    %v689 = vmul.f32 %v603, %v603
    %v690 = vmul.f32 %v606, %v606
    %v691 = vmul.f32 %v609, %v609
    %v692 = vmul.f32 %v612, %v612
    %v693 = vmul.f32 %v615, %v615
    %v694 = vmul.f32 %v618, %v618
    %v695 = vmul.f32 %v621, %v621
    %v696 = vmul.f32 %v624, %v624
    %v697 = vmul.f32 %v627, %v627
    %v698 = vadd.f32 %v666, %v667
    %v699 = vadd.f32 %v698, %v668
    %v700 = vadd.f32 %v699, %v669
    %v701 = vadd.f32 %v700, %v670
    %v702 = vadd.f32 %v701, %v671
    %v703 = vadd.f32 %v702, %v672
    %v704 = vadd.f32 %v703, %v673
    %v705 = vadd.f32 %v704, %v674
    %v706 = vadd.f32 %v705, %v675
    %v707 = vadd.f32 %v706, %v676
    %v708 = vadd.f32 %v707, %v677
    %v709 = vadd.f32 %v708, %v678
    %v710 = vadd.f32 %v709, %v679
    %v711 = vadd.f32 %v710, %v680
    %v712 = vadd.f32 %v711, %v681
    %v713 = vadd.f32 %v712, %v682
    %v714 = vadd.f32 %v713, %v683
    %v715 = vadd.f32 %v714, %v684
    %v716 = vadd.f32 %v715, %v685
    %v717 = vadd.f32 %v716, %v686
    %v718 = vadd.f32 %v717, %v687
    %v719 = vadd.f32 %v718, %v688
    %v720 = vadd.f32 %v719, %v689
    %v721 = vadd.f32 %v720, %v690
    %v722 = vadd.f32 %v721, %v691
    %v723 = vadd.f32 %v722, %v692
    %v724 = vadd.f32 %v723, %v693
    %v725 = vadd.f32 %v724, %v694
    %v726 = vadd.f32 %v725, %v695
    %v727 = vadd.f32 %v726, %v696
    %v728 = vadd.f32 %v727, %v697
    %v729 = vrot.slane %v728, 4
    %v730 = vadd.f32 %v728, %v729
    %v731 = vrot.slane %v730, 2
    %v732 = vadd.f32 %v730, %v731
    %v733 = vrot.slane %v732, 1
    %v734 = vadd.f32 %v732, %v733
    %v735 = vmul.f32 %v665, 0.00390625
    %v736 = vmul.f32 %v734, 0.00390625
    %v737 = vmul.f32 %v735, %v735
    %v738 = vsub.f32 %v736, %v737
    %v739 = vmax.f32 %v738, 0.0
    %v740 = vld [vmem:[%s2 + $0x2] sm:$0x1]
    %v741 = vld [vmem:[%s2 + $0x3] sm:$0x1]
    %v742 = vadd.f32 %v739, 1e-05
    %v743 = vrsqrt.pop %v742
    %v744 = vmul.f32 %v743, %v742
    %v745 = vmul.f32 %v744, %v743
    %v746 = vmul.f32 0.5, %v745
    %v747 = vsub.f32 1.5, %v746
    %v748 = vmul.f32 %v743, %v747
    %vm749 = vweird.f32 %v742
    %vm750 = vweird.f32 %v743
    %vm751 = vmor %vm749, %vm750
    %v752 = vsel %vm751, %v743, %v748
    %v753 = vmul.f32 %v740, %v752
    %v754 = vmul.f32 %v735, %v753
    %v755 = vsub.f32 %v741, %v754
    %v756 = vperm.slane %v753, 0
    %v757 = vmul.f32 %v534, %v756
    %v758 = vmul.f32 %v537, %v756
    %v759 = vmul.f32 %v540, %v756
    %v760 = vmul.f32 %v543, %v756
    %v761 = vmul.f32 %v546, %v756
    %v762 = vmul.f32 %v549, %v756
    %v763 = vmul.f32 %v552, %v756
    %v764 = vmul.f32 %v555, %v756
    %v765 = vmul.f32 %v558, %v756
    %v766 = vmul.f32 %v561, %v756
    %v767 = vmul.f32 %v564, %v756
    %v768 = vmul.f32 %v567, %v756
    %v769 = vmul.f32 %v570, %v756
    %v770 = vmul.f32 %v573, %v756
    %v771 = vmul.f32 %v576, %v756
    %v772 = vmul.f32 %v579, %v756
    %v773 = vmul.f32 %v582, %v756
    %v774 = vmul.f32 %v585, %v756
    %v775 = vmul.f32 %v588, %v756
    %v776 = vmul.f32 %v591, %v756
    %v777 = vmul.f32 %v594, %v756
    %v778 = vmul.f32 %v597, %v756
    %v779 = vmul.f32 %v600, %v756
    %v780 = vmul.f32 %v603, %v756
    %v781 = vmul.f32 %v606, %v756
    %v782 = vmul.f32 %v609, %v756
    %v783 = vmul.f32 %v612, %v756
    %v784 = vmul.f32 %v615, %v756
    %v785 = vmul.f32 %v618, %v756
    %v786 = vmul.f32 %v621, %v756
    %v787 = vmul.f32 %v624, %v756
    %v788 = vmul.f32 %v627, %v756
    %v789 = vperm.slane %v755, 0
    %v790 = vadd.f32 %v757, %v789
    %v791 = vadd.f32 %v758, %v789
    %v792 = vadd.f32 %v759, %v789
    %v793 = vadd.f32 %v760, %v789
    %v794 = vadd.f32 %v761, %v789
    %v795 = vadd.f32 %v762, %v789
    %v796 = vadd.f32 %v763, %v789
    %v797 = vadd.f32 %v764, %v789
    %v798 = vadd.f32 %v765, %v789
    %v799 = vadd.f32 %v766, %v789
    %v800 = vadd.f32 %v767, %v789
    %v801 = vadd.f32 %v768, %v789
    %v802 = vadd.f32 %v769, %v789
    %v803 = vadd.f32 %v770, %v789
    %v804 = vadd.f32 %v771, %v789
    %v805 = vadd.f32 %v772, %v789
    %v806 = vadd.f32 %v773, %v789
    %v807 = vadd.f32 %v774, %v789
    %v808 = vadd.f32 %v775, %v789
    %v809 = vadd.f32 %v776, %v789
    %v810 = vadd.f32 %v777, %v789
    %v811 = vadd.f32 %v778, %v789
    %v812 = vadd.f32 %v779, %v789
    %v813 = vadd.f32 %v780, %v789
    %v814 = vadd.f32 %v781, %v789
    %v815 = vadd.f32 %v782, %v789
    %v816 = vadd.f32 %v783, %v789
    %v817 = vadd.f32 %v784, %v789
    %v818 = vadd.f32 %v785, %v789
    %v819 = vadd.f32 %v786, %v789
    %v820 = vadd.f32 %v787, %v789
    %v821 = vadd.f32 %v788, %v789
    %v822 = vmax.f32 %v790, 0.0
    %v823 = vmax.f32 %v791, 0.0
    %v824 = vmax.f32 %v792, 0.0
    %v825 = vmax.f32 %v793, 0.0
    %v826 = vmax.f32 %v794, 0.0
    %v827 = vmax.f32 %v795, 0.0
    %v828 = vmax.f32 %v796, 0.0
    %v829 = vmax.f32 %v797, 0.0
    %v830 = vmax.f32 %v798, 0.0
    %v831 = vmax.f32 %v799, 0.0
    %v832 = vmax.f32 %v800, 0.0
    %v833 = vmax.f32 %v801, 0.0
    %v834 = vmax.f32 %v802, 0.0
    %v835 = vmax.f32 %v803, 0.0
    %v836 = vmax.f32 %v804, 0.0
    %v837 = vmax.f32 %v805, 0.0
    %v838 = vmax.f32 %v806, 0.0
    %v839 = vmax.f32 %v807, 0.0
    %v840 = vmax.f32 %v808, 0.0
    %v841 = vmax.f32 %v809, 0.0
    %v842 = vmax.f32 %v810, 0.0
    %v843 = vmax.f32 %v811, 0.0
    %v844 = vmax.f32 %v812, 0.0
    %v845 = vmax.f32 %v813, 0.0
    %v846 = vmax.f32 %v814, 0.0
    %v847 = vmax.f32 %v815, 0.0
    %v848 = vmax.f32 %v816, 0.0
    %v849 = vmax.f32 %v817, 0.0
    %v850 = vmax.f32 %v818, 0.0
    %v851 = vmax.f32 %v819, 0.0
    %v852 = vmax.f32 %v820, 0.0
    %v853 = vmax.f32 %v821, 0.0
    %v854 = vld [vmem:[#allocation2 + $0x100] sm:$0xff]
    %v855 = vld [vmem:[#allocation2 + $0x108] sm:$0xff]
    %v856 = vld [vmem:[#allocation2 + $0x110] sm:$0xff]
    %v857 = vld [vmem:[#allocation2 + $0x118] sm:$0xff]
    %v858 = vld [vmem:[#allocation2 + $0x120] sm:$0xff]
    %v859 = vld [vmem:[#allocation2 + $0x128] sm:$0xff]
    %v860 = vld [vmem:[#allocation2 + $0x130] sm:$0xff]
    %v861 = vld [vmem:[#allocation2 + $0x138] sm:$0xff]
    %v862 = vld [vmem:[#allocation2 + $0x140] sm:$0xff]
    %v863 = vld [vmem:[#allocation2 + $0x148] sm:$0xff]
    %v864 = vld [vmem:[#allocation2 + $0x150] sm:$0xff]
    %v865 = vld [vmem:[#allocation2 + $0x158] sm:$0xff]
    %v866 = vld [vmem:[#allocation2 + $0x160] sm:$0xff]
    %v867 = vld [vmem:[#allocation2 + $0x168] sm:$0xff]
    %v868 = vld [vmem:[#allocation2 + $0x170] sm:$0xff]
    %v869 = vld [vmem:[#allocation2 + $0x178] sm:$0xff]
    %870 = vmatpush.msra.mxu0 %v869
    %871 = vmatpush.msra.mxu0 %v868
    %872 = vmatpush.msra.mxu0 %v867
    %873 = vmatpush.msra.mxu0 %v866
    %874 = vmatpush.msra.mxu0 %v865
    %875 = vmatpush.msra.mxu0 %v864
    %876 = vmatpush.msra.mxu0 %v863
    %877 = vmatpush.msra.mxu0 %v862
    %878 = vmatpush.msra.mxu0 %v861
    %879 = vmatpush.msra.mxu0 %v860
    %880 = vmatpush.msra.mxu0 %v859
    %881 = vmatpush.msra.mxu0 %v858
    %882 = vmatpush.msra.mxu0 %v857
    %883 = vmatpush.msra.mxu0 %v856
    %884 = vmatpush.msra.mxu0 %v855
    %885 = vmatpush.msra.mxu0 %v854
    %886 = vmatmul.f32.gmra.mxu0 %v822
    %v887 = vpop.f32.mrf.mxu0
    %v888 = vadd.f32 0.0, %v887
    %889 = vmatmul.f32.gmra.mxu0 %v823
    %v890 = vpop.f32.mrf.mxu0
    %v891 = vadd.f32 0.0, %v890
    %892 = vmatmul.f32.gmra.mxu0 %v824
    %v893 = vpop.f32.mrf.mxu0
    %v894 = vadd.f32 0.0, %v893
    %895 = vmatmul.f32.gmra.mxu0 %v825
    %v896 = vpop.f32.mrf.mxu0
    %v897 = vadd.f32 0.0, %v896
    %898 = vmatmul.f32.gmra.mxu0 %v826
    %v899 = vpop.f32.mrf.mxu0
    %v900 = vadd.f32 0.0, %v899
    %901 = vmatmul.f32.gmra.mxu0 %v827
    %v902 = vpop.f32.mrf.mxu0
    %v903 = vadd.f32 0.0, %v902
    %904 = vmatmul.f32.gmra.mxu0 %v828
    %v905 = vpop.f32.mrf.mxu0
    %v906 = vadd.f32 0.0, %v905
    %907 = vmatmul.f32.gmra.mxu0 %v829
    %v908 = vpop.f32.mrf.mxu0
    %v909 = vadd.f32 0.0, %v908
    %910 = vmatmul.f32.gmra.mxu0 %v830
    %v911 = vpop.f32.mrf.mxu0
    %v912 = vadd.f32 0.0, %v911
    %913 = vmatmul.f32.gmra.mxu0 %v831
    %v914 = vpop.f32.mrf.mxu0
    %v915 = vadd.f32 0.0, %v914
    %916 = vmatmul.f32.gmra.mxu0 %v832
    %v917 = vpop.f32.mrf.mxu0
    %v918 = vadd.f32 0.0, %v917
    %919 = vmatmul.f32.gmra.mxu0 %v833
    %v920 = vpop.f32.mrf.mxu0
    %v921 = vadd.f32 0.0, %v920
    %922 = vmatmul.f32.gmra.mxu0 %v834
    %v923 = vpop.f32.mrf.mxu0
    %v924 = vadd.f32 0.0, %v923
    %925 = vmatmul.f32.gmra.mxu0 %v835
    %v926 = vpop.f32.mrf.mxu0
    %v927 = vadd.f32 0.0, %v926
    %928 = vmatmul.f32.gmra.mxu0 %v836
    %v929 = vpop.f32.mrf.mxu0
    %v930 = vadd.f32 0.0, %v929
    %931 = vmatmul.f32.gmra.mxu0 %v837
    %v932 = vpop.f32.mrf.mxu0
    %v933 = vadd.f32 0.0, %v932
    %934 = vmatmul.f32.gmra.mxu0 %v838
    %v935 = vpop.f32.mrf.mxu0
    %v936 = vadd.f32 0.0, %v935
    %937 = vmatmul.f32.gmra.mxu0 %v839
    %v938 = vpop.f32.mrf.mxu0
    %v939 = vadd.f32 0.0, %v938
    %940 = vmatmul.f32.gmra.mxu0 %v840
    %v941 = vpop.f32.mrf.mxu0
    %v942 = vadd.f32 0.0, %v941
    %943 = vmatmul.f32.gmra.mxu0 %v841
    %v944 = vpop.f32.mrf.mxu0
    %v945 = vadd.f32 0.0, %v944
    %946 = vmatmul.f32.gmra.mxu0 %v842
    %v947 = vpop.f32.mrf.mxu0
    %v948 = vadd.f32 0.0, %v947
    %949 = vmatmul.f32.gmra.mxu0 %v843
    %v950 = vpop.f32.mrf.mxu0
    %v951 = vadd.f32 0.0, %v950
    %952 = vmatmul.f32.gmra.mxu0 %v844
    %v953 = vpop.f32.mrf.mxu0
    %v954 = vadd.f32 0.0, %v953
    %955 = vmatmul.f32.gmra.mxu0 %v845
    %v956 = vpop.f32.mrf.mxu0
    %v957 = vadd.f32 0.0, %v956
    %958 = vmatmul.f32.gmra.mxu0 %v846
    %v959 = vpop.f32.mrf.mxu0
    %v960 = vadd.f32 0.0, %v959
    %961 = vmatmul.f32.gmra.mxu0 %v847
    %v962 = vpop.f32.mrf.mxu0
    %v963 = vadd.f32 0.0, %v962
    %964 = vmatmul.f32.gmra.mxu0 %v848
    %v965 = vpop.f32.mrf.mxu0
    %v966 = vadd.f32 0.0, %v965
    %967 = vmatmul.f32.gmra.mxu0 %v849
    %v968 = vpop.f32.mrf.mxu0
    %v969 = vadd.f32 0.0, %v968
    %970 = vmatmul.f32.gmra.mxu0 %v850
    %v971 = vpop.f32.mrf.mxu0
    %v972 = vadd.f32 0.0, %v971
    %973 = vmatmul.f32.gmra.mxu0 %v851
    %v974 = vpop.f32.mrf.mxu0
    %v975 = vadd.f32 0.0, %v974
    %976 = vmatmul.f32.gmra.mxu0 %v852
    %v977 = vpop.f32.mrf.mxu0
    %v978 = vadd.f32 0.0, %v977
    %979 = vmatmul.f32.gmra.mxu0 %v853
    %v980 = vpop.f32.mrf.mxu0
    %v981 = vadd.f32 0.0, %v980
    %982 = vdwg.mxu0
    %v983 = vadd.f32 %v888, %v891
    %v984 = vadd.f32 %v983, %v894
    %v985 = vadd.f32 %v984, %v897
    %v986 = vadd.f32 %v985, %v900
    %v987 = vadd.f32 %v986, %v903
    %v988 = vadd.f32 %v987, %v906
    %v989 = vadd.f32 %v988, %v909
    %v990 = vadd.f32 %v989, %v912
    %v991 = vadd.f32 %v990, %v915
    %v992 = vadd.f32 %v991, %v918
    %v993 = vadd.f32 %v992, %v921
    %v994 = vadd.f32 %v993, %v924
    %v995 = vadd.f32 %v994, %v927
    %v996 = vadd.f32 %v995, %v930
    %v997 = vadd.f32 %v996, %v933
    %v998 = vadd.f32 %v997, %v936
    %v999 = vadd.f32 %v998, %v939
    %v1000 = vadd.f32 %v999, %v942
    %v1001 = vadd.f32 %v1000, %v945
    %v1002 = vadd.f32 %v1001, %v948
    %v1003 = vadd.f32 %v1002, %v951
    %v1004 = vadd.f32 %v1003, %v954
    %v1005 = vadd.f32 %v1004, %v957
    %v1006 = vadd.f32 %v1005, %v960
    %v1007 = vadd.f32 %v1006, %v963
    %v1008 = vadd.f32 %v1007, %v966
    %v1009 = vadd.f32 %v1008, %v969
    %v1010 = vadd.f32 %v1009, %v972
    %v1011 = vadd.f32 %v1010, %v975
    %v1012 = vadd.f32 %v1011, %v978
    %v1013 = vadd.f32 %v1012, %v981
    %v1014 = vrot.slane %v1013, 4
    %v1015 = vadd.f32 %v1013, %v1014
    %v1016 = vrot.slane %v1015, 2
    %v1017 = vadd.f32 %v1015, %v1016
    %v1018 = vrot.slane %v1017, 1
    %v1019 = vadd.f32 %v1017, %v1018
    %v1020 = vmul.f32 %v888, %v888
    %v1021 = vmul.f32 %v891, %v891
    %v1022 = vmul.f32 %v894, %v894
    %v1023 = vmul.f32 %v897, %v897
    %v1024 = vmul.f32 %v900, %v900
    %v1025 = vmul.f32 %v903, %v903
    %v1026 = vmul.f32 %v906, %v906
    %v1027 = vmul.f32 %v909, %v909
    %v1028 = vmul.f32 %v912, %v912
    %v1029 = vmul.f32 %v915, %v915
    %v1030 = vmul.f32 %v918, %v918
    %v1031 = vmul.f32 %v921, %v921
    %v1032 = vmul.f32 %v924, %v924
    %v1033 = vmul.f32 %v927, %v927
    %v1034 = vmul.f32 %v930, %v930
    %v1035 = vmul.f32 %v933, %v933
    %v1036 = vmul.f32 %v936, %v936
    %v1037 = vmul.f32 %v939, %v939
    %v1038 = vmul.f32 %v942, %v942
    %v1039 = vmul.f32 %v945, %v945
    %v1040 = vmul.f32 %v948, %v948
    %v1041 = vmul.f32 %v951, %v951
    %v1042 = vmul.f32 %v954, %v954
    %v1043 = vmul.f32 %v957, %v957
    %v1044 = vmul.f32 %v960, %v960
    %v1045 = vmul.f32 %v963, %v963
    %v1046 = vmul.f32 %v966, %v966
    %v1047 = vmul.f32 %v969, %v969
    %v1048 = vmul.f32 %v972, %v972
    %v1049 = vmul.f32 %v975, %v975
    %v1050 = vmul.f32 %v978, %v978
    %v1051 = vmul.f32 %v981, %v981
    %v1052 = vadd.f32 %v1020, %v1021
    %v1053 = vadd.f32 %v1052, %v1022
    %v1054 = vadd.f32 %v1053, %v1023
    %v1055 = vadd.f32 %v1054, %v1024
    %v1056 = vadd.f32 %v1055, %v1025
    %v1057 = vadd.f32 %v1056, %v1026
    %v1058 = vadd.f32 %v1057, %v1027
    %v1059 = vadd.f32 %v1058, %v1028
    %v1060 = vadd.f32 %v1059, %v1029
    %v1061 = vadd.f32 %v1060, %v1030
    %v1062 = vadd.f32 %v1061, %v1031
    %v1063 = vadd.f32 %v1062, %v1032
    %v1064 = vadd.f32 %v1063, %v1033
    %v1065 = vadd.f32 %v1064, %v1034
    %v1066 = vadd.f32 %v1065, %v1035
    %v1067 = vadd.f32 %v1066, %v1036
    %v1068 = vadd.f32 %v1067, %v1037
    %v1069 = vadd.f32 %v1068, %v1038
    %v1070 = vadd.f32 %v1069, %v1039
    %v1071 = vadd.f32 %v1070, %v1040
    %v1072 = vadd.f32 %v1071, %v1041
    %v1073 = vadd.f32 %v1072, %v1042
    %v1074 = vadd.f32 %v1073, %v1043
    %v1075 = vadd.f32 %v1074, %v1044
    %v1076 = vadd.f32 %v1075, %v1045
    %v1077 = vadd.f32 %v1076, %v1046
    %v1078 = vadd.f32 %v1077, %v1047
    %v1079 = vadd.f32 %v1078, %v1048
    %v1080 = vadd.f32 %v1079, %v1049
    %v1081 = vadd.f32 %v1080, %v1050
    %v1082 = vadd.f32 %v1081, %v1051
    %v1083 = vrot.slane %v1082, 4
    %v1084 = vadd.f32 %v1082, %v1083
    %v1085 = vrot.slane %v1084, 2
    %v1086 = vadd.f32 %v1084, %v1085
    %v1087 = vrot.slane %v1086, 1
    %v1088 = vadd.f32 %v1086, %v1087
    %v1089 = vmul.f32 %v1019, 0.00390625
    %v1090 = vmul.f32 %v1088, 0.00390625
    %v1091 = vmul.f32 %v1089, %v1089
    %v1092 = vsub.f32 %v1090, %v1091
    %v1093 = vmax.f32 %v1092, 0.0
    %v1094 = vld [vmem:[%s2 + $0x4] sm:$0x1]
    %v1095 = vld [vmem:[%s2 + $0x5] sm:$0x1]
    %v1096 = vadd.f32 %v1093, 1e-05
    %v1097 = vrsqrt.pop %v1096
    %v1098 = vmul.f32 %v1097, %v1096
    %v1099 = vmul.f32 %v1098, %v1097
    %v1100 = vmul.f32 0.5, %v1099
    %v1101 = vsub.f32 1.5, %v1100
    %v1102 = vmul.f32 %v1097, %v1101
    %vm1103 = vweird.f32 %v1096
    %vm1104 = vweird.f32 %v1097
    %vm1105 = vmor %vm1103, %vm1104
    %v1106 = vsel %vm1105, %v1097, %v1102
    %v1107 = vmul.f32 %v1094, %v1106
    %v1108 = vmul.f32 %v1089, %v1107
    %v1109 = vsub.f32 %v1095, %v1108
    %v1110 = vperm.slane %v1107, 0
    %v1111 = vmul.f32 %v888, %v1110
    %v1112 = vmul.f32 %v891, %v1110
    %v1113 = vmul.f32 %v894, %v1110
    %v1114 = vmul.f32 %v897, %v1110
    %v1115 = vmul.f32 %v900, %v1110
    %v1116 = vmul.f32 %v903, %v1110
    %v1117 = vmul.f32 %v906, %v1110
    %v1118 = vmul.f32 %v909, %v1110
    %v1119 = vmul.f32 %v912, %v1110
    %v1120 = vmul.f32 %v915, %v1110
    %v1121 = vmul.f32 %v918, %v1110
    %v1122 = vmul.f32 %v921, %v1110
    %v1123 = vmul.f32 %v924, %v1110
    %v1124 = vmul.f32 %v927, %v1110
    %v1125 = vmul.f32 %v930, %v1110
    %v1126 = vmul.f32 %v933, %v1110
    %v1127 = vmul.f32 %v936, %v1110
    %v1128 = vmul.f32 %v939, %v1110
    %v1129 = vmul.f32 %v942, %v1110
    %v1130 = vmul.f32 %v945, %v1110
    %v1131 = vmul.f32 %v948, %v1110
    %v1132 = vmul.f32 %v951, %v1110
    %v1133 = vmul.f32 %v954, %v1110
    %v1134 = vmul.f32 %v957, %v1110
    %v1135 = vmul.f32 %v960, %v1110
    %v1136 = vmul.f32 %v963, %v1110
    %v1137 = vmul.f32 %v966, %v1110
    %v1138 = vmul.f32 %v969, %v1110
    %v1139 = vmul.f32 %v972, %v1110
    %v1140 = vmul.f32 %v975, %v1110
    %v1141 = vmul.f32 %v978, %v1110
    %v1142 = vmul.f32 %v981, %v1110
    %v1143 = vperm.slane %v1109, 0
    %v1144 = vadd.f32 %v1111, %v1143
    %v1145 = vadd.f32 %v1112, %v1143
    %v1146 = vadd.f32 %v1113, %v1143
    %v1147 = vadd.f32 %v1114, %v1143
    %v1148 = vadd.f32 %v1115, %v1143
    %v1149 = vadd.f32 %v1116, %v1143
    %v1150 = vadd.f32 %v1117, %v1143
    %v1151 = vadd.f32 %v1118, %v1143
    %v1152 = vadd.f32 %v1119, %v1143
    %v1153 = vadd.f32 %v1120, %v1143
    %v1154 = vadd.f32 %v1121, %v1143
    %v1155 = vadd.f32 %v1122, %v1143
    %v1156 = vadd.f32 %v1123, %v1143
    %v1157 = vadd.f32 %v1124, %v1143
    %v1158 = vadd.f32 %v1125, %v1143
    %v1159 = vadd.f32 %v1126, %v1143
    %v1160 = vadd.f32 %v1127, %v1143
    %v1161 = vadd.f32 %v1128, %v1143
    %v1162 = vadd.f32 %v1129, %v1143
    %v1163 = vadd.f32 %v1130, %v1143
    %v1164 = vadd.f32 %v1131, %v1143
    %v1165 = vadd.f32 %v1132, %v1143
    %v1166 = vadd.f32 %v1133, %v1143
    %v1167 = vadd.f32 %v1134, %v1143
    %v1168 = vadd.f32 %v1135, %v1143
    %v1169 = vadd.f32 %v1136, %v1143
    %v1170 = vadd.f32 %v1137, %v1143
    %v1171 = vadd.f32 %v1138, %v1143
    %v1172 = vadd.f32 %v1139, %v1143
    %v1173 = vadd.f32 %v1140, %v1143
    %v1174 = vadd.f32 %v1141, %v1143
    %v1175 = vadd.f32 %v1142, %v1143
    %v1176 = vmax.f32 %v1144, 0.0
    %v1177 = vmax.f32 %v1145, 0.0
    %v1178 = vmax.f32 %v1146, 0.0
    %v1179 = vmax.f32 %v1147, 0.0
    %v1180 = vmax.f32 %v1148, 0.0
    %v1181 = vmax.f32 %v1149, 0.0
    %v1182 = vmax.f32 %v1150, 0.0
    %v1183 = vmax.f32 %v1151, 0.0
    %v1184 = vmax.f32 %v1152, 0.0
    %v1185 = vmax.f32 %v1153, 0.0
    %v1186 = vmax.f32 %v1154, 0.0
    %v1187 = vmax.f32 %v1155, 0.0
    %v1188 = vmax.f32 %v1156, 0.0
    %v1189 = vmax.f32 %v1157, 0.0
    %v1190 = vmax.f32 %v1158, 0.0
    %v1191 = vmax.f32 %v1159, 0.0
    %v1192 = vmax.f32 %v1160, 0.0
    %v1193 = vmax.f32 %v1161, 0.0
    %v1194 = vmax.f32 %v1162, 0.0
    %v1195 = vmax.f32 %v1163, 0.0
    %v1196 = vmax.f32 %v1164, 0.0
    %v1197 = vmax.f32 %v1165, 0.0
    %v1198 = vmax.f32 %v1166, 0.0
    %v1199 = vmax.f32 %v1167, 0.0
    %v1200 = vmax.f32 %v1168, 0.0
    %v1201 = vmax.f32 %v1169, 0.0
    %v1202 = vmax.f32 %v1170, 0.0
    %v1203 = vmax.f32 %v1171, 0.0
    %v1204 = vmax.f32 %v1172, 0.0
    %v1205 = vmax.f32 %v1173, 0.0
    %v1206 = vmax.f32 %v1174, 0.0
    %v1207 = vmax.f32 %v1175, 0.0
    %v1208 = vld [vmem:[#allocation2 + $0x180] sm:$0xff]
    %v1209 = vld [vmem:[#allocation2 + $0x188] sm:$0xff]
    %v1210 = vld [vmem:[#allocation2 + $0x190] sm:$0xff]
    %v1211 = vld [vmem:[#allocation2 + $0x198] sm:$0xff]
    %v1212 = vld [vmem:[#allocation2 + $0x1a0] sm:$0xff]
    %v1213 = vld [vmem:[#allocation2 + $0x1a8] sm:$0xff]
    %v1214 = vld [vmem:[#allocation2 + $0x1b0] sm:$0xff]
    %v1215 = vld [vmem:[#allocation2 + $0x1b8] sm:$0xff]
    %v1216 = vld [vmem:[#allocation2 + $0x1c0] sm:$0xff]
    %v1217 = vld [vmem:[#allocation2 + $0x1c8] sm:$0xff]
    %v1218 = vld [vmem:[#allocation2 + $0x1d0] sm:$0xff]
    %v1219 = vld [vmem:[#allocation2 + $0x1d8] sm:$0xff]
    %v1220 = vld [vmem:[#allocation2 + $0x1e0] sm:$0xff]
    %v1221 = vld [vmem:[#allocation2 + $0x1e8] sm:$0xff]
    %v1222 = vld [vmem:[#allocation2 + $0x1f0] sm:$0xff]
    %v1223 = vld [vmem:[#allocation2 + $0x1f8] sm:$0xff]
    %1224 = vmatpush.msra.mxu0 %v1223
    %1225 = vmatpush.msra.mxu0 %v1222
    %1226 = vmatpush.msra.mxu0 %v1221
    %1227 = vmatpush.msra.mxu0 %v1220
    %1228 = vmatpush.msra.mxu0 %v1219
    %1229 = vmatpush.msra.mxu0 %v1218
    %1230 = vmatpush.msra.mxu0 %v1217
    %1231 = vmatpush.msra.mxu0 %v1216
    %1232 = vmatpush.msra.mxu0 %v1215
    %1233 = vmatpush.msra.mxu0 %v1214
    %1234 = vmatpush.msra.mxu0 %v1213
    %1235 = vmatpush.msra.mxu0 %v1212
    %1236 = vmatpush.msra.mxu0 %v1211
    %1237 = vmatpush.msra.mxu0 %v1210
    %1238 = vmatpush.msra.mxu0 %v1209
    %1239 = vmatpush.msra.mxu0 %v1208
    %1240 = vmatmul.f32.gmra.mxu0 %v1176
    %v1241 = vpop.f32.mrf.mxu0
    %v1242 = vadd.f32 0.0, %v1241
    %1243 = vmatmul.f32.gmra.mxu0 %v1177
    %v1244 = vpop.f32.mrf.mxu0
    %v1245 = vadd.f32 0.0, %v1244
    %1246 = vmatmul.f32.gmra.mxu0 %v1178
    %v1247 = vpop.f32.mrf.mxu0
    %v1248 = vadd.f32 0.0, %v1247
    %1249 = vmatmul.f32.gmra.mxu0 %v1179
    %v1250 = vpop.f32.mrf.mxu0
    %v1251 = vadd.f32 0.0, %v1250
    %1252 = vmatmul.f32.gmra.mxu0 %v1180
    %v1253 = vpop.f32.mrf.mxu0
    %v1254 = vadd.f32 0.0, %v1253
    %1255 = vmatmul.f32.gmra.mxu0 %v1181
    %v1256 = vpop.f32.mrf.mxu0
    %v1257 = vadd.f32 0.0, %v1256
    %1258 = vmatmul.f32.gmra.mxu0 %v1182
    %v1259 = vpop.f32.mrf.mxu0
    %v1260 = vadd.f32 0.0, %v1259
    %1261 = vmatmul.f32.gmra.mxu0 %v1183
    %v1262 = vpop.f32.mrf.mxu0
    %v1263 = vadd.f32 0.0, %v1262
    %1264 = vmatmul.f32.gmra.mxu0 %v1184
    %v1265 = vpop.f32.mrf.mxu0
    %v1266 = vadd.f32 0.0, %v1265
    %1267 = vmatmul.f32.gmra.mxu0 %v1185
    %v1268 = vpop.f32.mrf.mxu0
    %v1269 = vadd.f32 0.0, %v1268
    %1270 = vmatmul.f32.gmra.mxu0 %v1186
    %v1271 = vpop.f32.mrf.mxu0
    %v1272 = vadd.f32 0.0, %v1271
    %1273 = vmatmul.f32.gmra.mxu0 %v1187
    %v1274 = vpop.f32.mrf.mxu0
    %v1275 = vadd.f32 0.0, %v1274
    %1276 = vmatmul.f32.gmra.mxu0 %v1188
    %v1277 = vpop.f32.mrf.mxu0
    %v1278 = vadd.f32 0.0, %v1277
    %1279 = vmatmul.f32.gmra.mxu0 %v1189
    %v1280 = vpop.f32.mrf.mxu0
    %v1281 = vadd.f32 0.0, %v1280
    %1282 = vmatmul.f32.gmra.mxu0 %v1190
    %v1283 = vpop.f32.mrf.mxu0
    %v1284 = vadd.f32 0.0, %v1283
    %1285 = vmatmul.f32.gmra.mxu0 %v1191
    %v1286 = vpop.f32.mrf.mxu0
    %v1287 = vadd.f32 0.0, %v1286
    %1288 = vmatmul.f32.gmra.mxu0 %v1192
    %v1289 = vpop.f32.mrf.mxu0
    %v1290 = vadd.f32 0.0, %v1289
    %1291 = vmatmul.f32.gmra.mxu0 %v1193
    %v1292 = vpop.f32.mrf.mxu0
    %v1293 = vadd.f32 0.0, %v1292
    %1294 = vmatmul.f32.gmra.mxu0 %v1194
    %v1295 = vpop.f32.mrf.mxu0
    %v1296 = vadd.f32 0.0, %v1295
    %1297 = vmatmul.f32.gmra.mxu0 %v1195
    %v1298 = vpop.f32.mrf.mxu0
    %v1299 = vadd.f32 0.0, %v1298
    %1300 = vmatmul.f32.gmra.mxu0 %v1196
    %v1301 = vpop.f32.mrf.mxu0
    %v1302 = vadd.f32 0.0, %v1301
    %1303 = vmatmul.f32.gmra.mxu0 %v1197
    %v1304 = vpop.f32.mrf.mxu0
    %v1305 = vadd.f32 0.0, %v1304
    %1306 = vmatmul.f32.gmra.mxu0 %v1198
    %v1307 = vpop.f32.mrf.mxu0
    %v1308 = vadd.f32 0.0, %v1307
    %1309 = vmatmul.f32.gmra.mxu0 %v1199
    %v1310 = vpop.f32.mrf.mxu0
    %v1311 = vadd.f32 0.0, %v1310
    %1312 = vmatmul.f32.gmra.mxu0 %v1200
    %v1313 = vpop.f32.mrf.mxu0
    %v1314 = vadd.f32 0.0, %v1313
    %1315 = vmatmul.f32.gmra.mxu0 %v1201
    %v1316 = vpop.f32.mrf.mxu0
    %v1317 = vadd.f32 0.0, %v1316
    %1318 = vmatmul.f32.gmra.mxu0 %v1202
    %v1319 = vpop.f32.mrf.mxu0
    %v1320 = vadd.f32 0.0, %v1319
    %1321 = vmatmul.f32.gmra.mxu0 %v1203
    %v1322 = vpop.f32.mrf.mxu0
    %v1323 = vadd.f32 0.0, %v1322
    %1324 = vmatmul.f32.gmra.mxu0 %v1204
    %v1325 = vpop.f32.mrf.mxu0
    %v1326 = vadd.f32 0.0, %v1325
    %1327 = vmatmul.f32.gmra.mxu0 %v1205
    %v1328 = vpop.f32.mrf.mxu0
    %v1329 = vadd.f32 0.0, %v1328
    %1330 = vmatmul.f32.gmra.mxu0 %v1206
    %v1331 = vpop.f32.mrf.mxu0
    %v1332 = vadd.f32 0.0, %v1331
    %1333 = vmatmul.f32.gmra.mxu0 %v1207
    %v1334 = vpop.f32.mrf.mxu0
    %v1335 = vadd.f32 0.0, %v1334
    %1336 = vdwg.mxu0
    %v1337 = vadd.f32 %v1242, %v1245
    %v1338 = vadd.f32 %v1337, %v1248
    %v1339 = vadd.f32 %v1338, %v1251
    %v1340 = vadd.f32 %v1339, %v1254
    %v1341 = vadd.f32 %v1340, %v1257
    %v1342 = vadd.f32 %v1341, %v1260
    %v1343 = vadd.f32 %v1342, %v1263
    %v1344 = vadd.f32 %v1343, %v1266
    %v1345 = vadd.f32 %v1344, %v1269
    %v1346 = vadd.f32 %v1345, %v1272
    %v1347 = vadd.f32 %v1346, %v1275
    %v1348 = vadd.f32 %v1347, %v1278
    %v1349 = vadd.f32 %v1348, %v1281
    %v1350 = vadd.f32 %v1349, %v1284
    %v1351 = vadd.f32 %v1350, %v1287
    %v1352 = vadd.f32 %v1351, %v1290
    %v1353 = vadd.f32 %v1352, %v1293
    %v1354 = vadd.f32 %v1353, %v1296
    %v1355 = vadd.f32 %v1354, %v1299
    %v1356 = vadd.f32 %v1355, %v1302
    %v1357 = vadd.f32 %v1356, %v1305
    %v1358 = vadd.f32 %v1357, %v1308
    %v1359 = vadd.f32 %v1358, %v1311
    %v1360 = vadd.f32 %v1359, %v1314
    %v1361 = vadd.f32 %v1360, %v1317
    %v1362 = vadd.f32 %v1361, %v1320
    %v1363 = vadd.f32 %v1362, %v1323
    %v1364 = vadd.f32 %v1363, %v1326
    %v1365 = vadd.f32 %v1364, %v1329
    %v1366 = vadd.f32 %v1365, %v1332
    %v1367 = vadd.f32 %v1366, %v1335
    %v1368 = vrot.slane %v1367, 4
    %v1369 = vadd.f32 %v1367, %v1368
    %v1370 = vrot.slane %v1369, 2
    %v1371 = vadd.f32 %v1369, %v1370
    %v1372 = vrot.slane %v1371, 1
    %v1373 = vadd.f32 %v1371, %v1372
    %v1374 = vmul.f32 %v1242, %v1242
    %v1375 = vmul.f32 %v1245, %v1245
    %v1376 = vmul.f32 %v1248, %v1248
    %v1377 = vmul.f32 %v1251, %v1251
    %v1378 = vmul.f32 %v1254, %v1254
    %v1379 = vmul.f32 %v1257, %v1257
    %v1380 = vmul.f32 %v1260, %v1260
    %v1381 = vmul.f32 %v1263, %v1263
    %v1382 = vmul.f32 %v1266, %v1266
    %v1383 = vmul.f32 %v1269, %v1269
    %v1384 = vmul.f32 %v1272, %v1272
    %v1385 = vmul.f32 %v1275, %v1275
    %v1386 = vmul.f32 %v1278, %v1278
    %v1387 = vmul.f32 %v1281, %v1281
    %v1388 = vmul.f32 %v1284, %v1284
    %v1389 = vmul.f32 %v1287, %v1287
    %v1390 = vmul.f32 %v1290, %v1290
    %v1391 = vmul.f32 %v1293, %v1293
    %v1392 = vmul.f32 %v1296, %v1296
    %v1393 = vmul.f32 %v1299, %v1299
    %v1394 = vmul.f32 %v1302, %v1302
    %v1395 = vmul.f32 %v1305, %v1305
    %v1396 = vmul.f32 %v1308, %v1308
    %v1397 = vmul.f32 %v1311, %v1311
    %v1398 = vmul.f32 %v1314, %v1314
    %v1399 = vmul.f32 %v1317, %v1317
    %v1400 = vmul.f32 %v1320, %v1320
    %v1401 = vmul.f32 %v1323, %v1323
    %v1402 = vmul.f32 %v1326, %v1326
    %v1403 = vmul.f32 %v1329, %v1329
    %v1404 = vmul.f32 %v1332, %v1332
    %v1405 = vmul.f32 %v1335, %v1335
    %v1406 = vadd.f32 %v1374, %v1375
    %v1407 = vadd.f32 %v1406, %v1376
    %v1408 = vadd.f32 %v1407, %v1377
    %v1409 = vadd.f32 %v1408, %v1378
    %v1410 = vadd.f32 %v1409, %v1379
    %v1411 = vadd.f32 %v1410, %v1380
    %v1412 = vadd.f32 %v1411, %v1381
    %v1413 = vadd.f32 %v1412, %v1382
    %v1414 = vadd.f32 %v1413, %v1383
    %v1415 = vadd.f32 %v1414, %v1384
    %v1416 = vadd.f32 %v1415, %v1385
    %v1417 = vadd.f32 %v1416, %v1386
    %v1418 = vadd.f32 %v1417, %v1387
    %v1419 = vadd.f32 %v1418, %v1388
    %v1420 = vadd.f32 %v1419, %v1389
    %v1421 = vadd.f32 %v1420, %v1390
    %v1422 = vadd.f32 %v1421, %v1391
    %v1423 = vadd.f32 %v1422, %v1392
    %v1424 = vadd.f32 %v1423, %v1393
    %v1425 = vadd.f32 %v1424, %v1394
    %v1426 = vadd.f32 %v1425, %v1395
    %v1427 = vadd.f32 %v1426, %v1396
    %v1428 = vadd.f32 %v1427, %v1397
    %v1429 = vadd.f32 %v1428, %v1398
    %v1430 = vadd.f32 %v1429, %v1399
    %v1431 = vadd.f32 %v1430, %v1400
    %v1432 = vadd.f32 %v1431, %v1401
    %v1433 = vadd.f32 %v1432, %v1402
    %v1434 = vadd.f32 %v1433, %v1403
    %v1435 = vadd.f32 %v1434, %v1404
    %v1436 = vadd.f32 %v1435, %v1405
    %v1437 = vrot.slane %v1436, 4
    %v1438 = vadd.f32 %v1436, %v1437
    %v1439 = vrot.slane %v1438, 2
    %v1440 = vadd.f32 %v1438, %v1439
    %v1441 = vrot.slane %v1440, 1
    %v1442 = vadd.f32 %v1440, %v1441
    %v1443 = vmul.f32 %v1373, 0.00390625
    %v1444 = vmul.f32 %v1442, 0.00390625
    %v1445 = vmul.f32 %v1443, %v1443
    %v1446 = vsub.f32 %v1444, %v1445
    %v1447 = vmax.f32 %v1446, 0.0
    %v1448 = vld [vmem:[%s2 + $0x6] sm:$0x1]
    %v1449 = vld [vmem:[%s2 + $0x7] sm:$0x1]
    %v1450 = vadd.f32 %v1447, 1e-05
    %v1451 = vrsqrt.pop %v1450
    %v1452 = vmul.f32 %v1451, %v1450
    %v1453 = vmul.f32 %v1452, %v1451
    %v1454 = vmul.f32 0.5, %v1453
    %v1455 = vsub.f32 1.5, %v1454
    %v1456 = vmul.f32 %v1451, %v1455
    %vm1457 = vweird.f32 %v1450
    %vm1458 = vweird.f32 %v1451
    %vm1459 = vmor %vm1457, %vm1458
    %v1460 = vsel %vm1459, %v1451, %v1456
    %v1461 = vmul.f32 %v1448, %v1460
    %v1462 = vmul.f32 %v1443, %v1461
    %v1463 = vsub.f32 %v1449, %v1462
    %v1464 = vperm.slane %v1461, 0
    %v1465 = vmul.f32 %v1242, %v1464
    %v1466 = vmul.f32 %v1245, %v1464
    %v1467 = vmul.f32 %v1248, %v1464
    %v1468 = vmul.f32 %v1251, %v1464
    %v1469 = vmul.f32 %v1254, %v1464
    %v1470 = vmul.f32 %v1257, %v1464
    %v1471 = vmul.f32 %v1260, %v1464
    %v1472 = vmul.f32 %v1263, %v1464
    %v1473 = vmul.f32 %v1266, %v1464
    %v1474 = vmul.f32 %v1269, %v1464
    %v1475 = vmul.f32 %v1272, %v1464
    %v1476 = vmul.f32 %v1275, %v1464
    %v1477 = vmul.f32 %v1278, %v1464
    %v1478 = vmul.f32 %v1281, %v1464
    %v1479 = vmul.f32 %v1284, %v1464
    %v1480 = vmul.f32 %v1287, %v1464
    %v1481 = vmul.f32 %v1290, %v1464
    %v1482 = vmul.f32 %v1293, %v1464
    %v1483 = vmul.f32 %v1296, %v1464
    %v1484 = vmul.f32 %v1299, %v1464
    %v1485 = vmul.f32 %v1302, %v1464
    %v1486 = vmul.f32 %v1305, %v1464
    %v1487 = vmul.f32 %v1308, %v1464
    %v1488 = vmul.f32 %v1311, %v1464
    %v1489 = vmul.f32 %v1314, %v1464
    %v1490 = vmul.f32 %v1317, %v1464
    %v1491 = vmul.f32 %v1320, %v1464
    %v1492 = vmul.f32 %v1323, %v1464
    %v1493 = vmul.f32 %v1326, %v1464
    %v1494 = vmul.f32 %v1329, %v1464
    %v1495 = vmul.f32 %v1332, %v1464
    %v1496 = vmul.f32 %v1335, %v1464
    %v1497 = vperm.slane %v1463, 0
    %v1498 = vadd.f32 %v1465, %v1497
    %v1499 = vadd.f32 %v1466, %v1497
    %v1500 = vadd.f32 %v1467, %v1497
    %v1501 = vadd.f32 %v1468, %v1497
    %v1502 = vadd.f32 %v1469, %v1497
    %v1503 = vadd.f32 %v1470, %v1497
    %v1504 = vadd.f32 %v1471, %v1497
    %v1505 = vadd.f32 %v1472, %v1497
    %v1506 = vadd.f32 %v1473, %v1497
    %v1507 = vadd.f32 %v1474, %v1497
    %v1508 = vadd.f32 %v1475, %v1497
    %v1509 = vadd.f32 %v1476, %v1497
    %v1510 = vadd.f32 %v1477, %v1497
    %v1511 = vadd.f32 %v1478, %v1497
    %v1512 = vadd.f32 %v1479, %v1497
    %v1513 = vadd.f32 %v1480, %v1497
    %v1514 = vadd.f32 %v1481, %v1497
    %v1515 = vadd.f32 %v1482, %v1497
    %v1516 = vadd.f32 %v1483, %v1497
    %v1517 = vadd.f32 %v1484, %v1497
    %v1518 = vadd.f32 %v1485, %v1497
    %v1519 = vadd.f32 %v1486, %v1497
    %v1520 = vadd.f32 %v1487, %v1497
    %v1521 = vadd.f32 %v1488, %v1497
    %v1522 = vadd.f32 %v1489, %v1497
    %v1523 = vadd.f32 %v1490, %v1497
    %v1524 = vadd.f32 %v1491, %v1497
    %v1525 = vadd.f32 %v1492, %v1497
    %v1526 = vadd.f32 %v1493, %v1497
    %v1527 = vadd.f32 %v1494, %v1497
    %v1528 = vadd.f32 %v1495, %v1497
    %v1529 = vadd.f32 %v1496, %v1497
    %v1530 = vmax.f32 %v1498, 0.0
    %v1531 = vmax.f32 %v1499, 0.0
    %v1532 = vmax.f32 %v1500, 0.0
    %v1533 = vmax.f32 %v1501, 0.0
    %v1534 = vmax.f32 %v1502, 0.0
    %v1535 = vmax.f32 %v1503, 0.0
    %v1536 = vmax.f32 %v1504, 0.0
    %v1537 = vmax.f32 %v1505, 0.0
    %v1538 = vmax.f32 %v1506, 0.0
    %v1539 = vmax.f32 %v1507, 0.0
    %v1540 = vmax.f32 %v1508, 0.0
    %v1541 = vmax.f32 %v1509, 0.0
    %v1542 = vmax.f32 %v1510, 0.0
    %v1543 = vmax.f32 %v1511, 0.0
    %v1544 = vmax.f32 %v1512, 0.0
    %v1545 = vmax.f32 %v1513, 0.0
    %v1546 = vmax.f32 %v1514, 0.0
    %v1547 = vmax.f32 %v1515, 0.0
    %v1548 = vmax.f32 %v1516, 0.0
    %v1549 = vmax.f32 %v1517, 0.0
    %v1550 = vmax.f32 %v1518, 0.0
    %v1551 = vmax.f32 %v1519, 0.0
    %v1552 = vmax.f32 %v1520, 0.0
    %v1553 = vmax.f32 %v1521, 0.0
    %v1554 = vmax.f32 %v1522, 0.0
    %v1555 = vmax.f32 %v1523, 0.0
    %v1556 = vmax.f32 %v1524, 0.0
    %v1557 = vmax.f32 %v1525, 0.0
    %v1558 = vmax.f32 %v1526, 0.0
    %v1559 = vmax.f32 %v1527, 0.0
    %v1560 = vmax.f32 %v1528, 0.0
    %v1561 = vmax.f32 %v1529, 0.0
    %v1562 = vld [vmem:[#allocation2 + $0x200] sm:$0xff]
    %v1563 = vld [vmem:[#allocation2 + $0x208] sm:$0xff]
    %v1564 = vld [vmem:[#allocation2 + $0x210] sm:$0xff]
    %v1565 = vld [vmem:[#allocation2 + $0x218] sm:$0xff]
    %v1566 = vld [vmem:[#allocation2 + $0x220] sm:$0xff]
    %v1567 = vld [vmem:[#allocation2 + $0x228] sm:$0xff]
    %v1568 = vld [vmem:[#allocation2 + $0x230] sm:$0xff]
    %v1569 = vld [vmem:[#allocation2 + $0x238] sm:$0xff]
    %v1570 = vld [vmem:[#allocation2 + $0x240] sm:$0xff]
    %v1571 = vld [vmem:[#allocation2 + $0x248] sm:$0xff]
    %v1572 = vld [vmem:[#allocation2 + $0x250] sm:$0xff]
    %v1573 = vld [vmem:[#allocation2 + $0x258] sm:$0xff]
    %v1574 = vld [vmem:[#allocation2 + $0x260] sm:$0xff]
    %v1575 = vld [vmem:[#allocation2 + $0x268] sm:$0xff]
    %v1576 = vld [vmem:[#allocation2 + $0x270] sm:$0xff]
    %v1577 = vld [vmem:[#allocation2 + $0x278] sm:$0xff]
    %1578 = vmatpush.msra.mxu0 %v1577
    %1579 = vmatpush.msra.mxu0 %v1576
    %1580 = vmatpush.msra.mxu0 %v1575
    %1581 = vmatpush.msra.mxu0 %v1574
    %1582 = vmatpush.msra.mxu0 %v1573
    %1583 = vmatpush.msra.mxu0 %v1572
    %1584 = vmatpush.msra.mxu0 %v1571
    %1585 = vmatpush.msra.mxu0 %v1570
    %1586 = vmatpush.msra.mxu0 %v1569
    %1587 = vmatpush.msra.mxu0 %v1568
    %1588 = vmatpush.msra.mxu0 %v1567
    %1589 = vmatpush.msra.mxu0 %v1566
    %1590 = vmatpush.msra.mxu0 %v1565
    %1591 = vmatpush.msra.mxu0 %v1564
    %1592 = vmatpush.msra.mxu0 %v1563
    %1593 = vmatpush.msra.mxu0 %v1562
    %1594 = vmatmul.f32.gmra.mxu0 %v1530
    %v1595 = vpop.f32.mrf.mxu0
    %v1596 = vadd.f32 0.0, %v1595
    %1597 = vmatmul.f32.gmra.mxu0 %v1531
    %v1598 = vpop.f32.mrf.mxu0
    %v1599 = vadd.f32 0.0, %v1598
    %1600 = vmatmul.f32.gmra.mxu0 %v1532
    %v1601 = vpop.f32.mrf.mxu0
    %v1602 = vadd.f32 0.0, %v1601
    %1603 = vmatmul.f32.gmra.mxu0 %v1533
    %v1604 = vpop.f32.mrf.mxu0
    %v1605 = vadd.f32 0.0, %v1604
    %1606 = vmatmul.f32.gmra.mxu0 %v1534
    %v1607 = vpop.f32.mrf.mxu0
    %v1608 = vadd.f32 0.0, %v1607
    %1609 = vmatmul.f32.gmra.mxu0 %v1535
    %v1610 = vpop.f32.mrf.mxu0
    %v1611 = vadd.f32 0.0, %v1610
    %1612 = vmatmul.f32.gmra.mxu0 %v1536
    %v1613 = vpop.f32.mrf.mxu0
    %v1614 = vadd.f32 0.0, %v1613
    %1615 = vmatmul.f32.gmra.mxu0 %v1537
    %v1616 = vpop.f32.mrf.mxu0
    %v1617 = vadd.f32 0.0, %v1616
    %1618 = vmatmul.f32.gmra.mxu0 %v1538
    %v1619 = vpop.f32.mrf.mxu0
    %v1620 = vadd.f32 0.0, %v1619
    %1621 = vmatmul.f32.gmra.mxu0 %v1539
    %v1622 = vpop.f32.mrf.mxu0
    %v1623 = vadd.f32 0.0, %v1622
    %1624 = vmatmul.f32.gmra.mxu0 %v1540
    %v1625 = vpop.f32.mrf.mxu0
    %v1626 = vadd.f32 0.0, %v1625
    %1627 = vmatmul.f32.gmra.mxu0 %v1541
    %v1628 = vpop.f32.mrf.mxu0
    %v1629 = vadd.f32 0.0, %v1628
    %1630 = vmatmul.f32.gmra.mxu0 %v1542
    %v1631 = vpop.f32.mrf.mxu0
    %v1632 = vadd.f32 0.0, %v1631
    %1633 = vmatmul.f32.gmra.mxu0 %v1543
    %v1634 = vpop.f32.mrf.mxu0
    %v1635 = vadd.f32 0.0, %v1634
    %1636 = vmatmul.f32.gmra.mxu0 %v1544
    %v1637 = vpop.f32.mrf.mxu0
    %v1638 = vadd.f32 0.0, %v1637
    %1639 = vmatmul.f32.gmra.mxu0 %v1545
    %v1640 = vpop.f32.mrf.mxu0
    %v1641 = vadd.f32 0.0, %v1640
    %1642 = vmatmul.f32.gmra.mxu0 %v1546
    %v1643 = vpop.f32.mrf.mxu0
    %v1644 = vadd.f32 0.0, %v1643
    %1645 = vmatmul.f32.gmra.mxu0 %v1547
    %v1646 = vpop.f32.mrf.mxu0
    %v1647 = vadd.f32 0.0, %v1646
    %1648 = vmatmul.f32.gmra.mxu0 %v1548
    %v1649 = vpop.f32.mrf.mxu0
    %v1650 = vadd.f32 0.0, %v1649
    %1651 = vmatmul.f32.gmra.mxu0 %v1549
    %v1652 = vpop.f32.mrf.mxu0
    %v1653 = vadd.f32 0.0, %v1652
    %1654 = vmatmul.f32.gmra.mxu0 %v1550
    %v1655 = vpop.f32.mrf.mxu0
    %v1656 = vadd.f32 0.0, %v1655
    %1657 = vmatmul.f32.gmra.mxu0 %v1551
    %v1658 = vpop.f32.mrf.mxu0
    %v1659 = vadd.f32 0.0, %v1658
    %1660 = vmatmul.f32.gmra.mxu0 %v1552
    %v1661 = vpop.f32.mrf.mxu0
    %v1662 = vadd.f32 0.0, %v1661
    %1663 = vmatmul.f32.gmra.mxu0 %v1553
    %v1664 = vpop.f32.mrf.mxu0
    %v1665 = vadd.f32 0.0, %v1664
    %1666 = vmatmul.f32.gmra.mxu0 %v1554
    %v1667 = vpop.f32.mrf.mxu0
    %v1668 = vadd.f32 0.0, %v1667
    %1669 = vmatmul.f32.gmra.mxu0 %v1555
    %v1670 = vpop.f32.mrf.mxu0
    %v1671 = vadd.f32 0.0, %v1670
    %1672 = vmatmul.f32.gmra.mxu0 %v1556
    %v1673 = vpop.f32.mrf.mxu0
    %v1674 = vadd.f32 0.0, %v1673
    %1675 = vmatmul.f32.gmra.mxu0 %v1557
    %v1676 = vpop.f32.mrf.mxu0
    %v1677 = vadd.f32 0.0, %v1676
    %1678 = vmatmul.f32.gmra.mxu0 %v1558
    %v1679 = vpop.f32.mrf.mxu0
    %v1680 = vadd.f32 0.0, %v1679
    %1681 = vmatmul.f32.gmra.mxu0 %v1559
    %v1682 = vpop.f32.mrf.mxu0
    %v1683 = vadd.f32 0.0, %v1682
    %1684 = vmatmul.f32.gmra.mxu0 %v1560
    %v1685 = vpop.f32.mrf.mxu0
    %v1686 = vadd.f32 0.0, %v1685
    %1687 = vmatmul.f32.gmra.mxu0 %v1561
    %v1688 = vpop.f32.mrf.mxu0
    %v1689 = vadd.f32 0.0, %v1688
    %1690 = vdwg.mxu0
    %v1691 = vadd.f32 %v1596, %v1599
    %v1692 = vadd.f32 %v1691, %v1602
    %v1693 = vadd.f32 %v1692, %v1605
    %v1694 = vadd.f32 %v1693, %v1608
    %v1695 = vadd.f32 %v1694, %v1611
    %v1696 = vadd.f32 %v1695, %v1614
    %v1697 = vadd.f32 %v1696, %v1617
    %v1698 = vadd.f32 %v1697, %v1620
    %v1699 = vadd.f32 %v1698, %v1623
    %v1700 = vadd.f32 %v1699, %v1626
    %v1701 = vadd.f32 %v1700, %v1629
    %v1702 = vadd.f32 %v1701, %v1632
    %v1703 = vadd.f32 %v1702, %v1635
    %v1704 = vadd.f32 %v1703, %v1638
    %v1705 = vadd.f32 %v1704, %v1641
    %v1706 = vadd.f32 %v1705, %v1644
    %v1707 = vadd.f32 %v1706, %v1647
    %v1708 = vadd.f32 %v1707, %v1650
    %v1709 = vadd.f32 %v1708, %v1653
    %v1710 = vadd.f32 %v1709, %v1656
    %v1711 = vadd.f32 %v1710, %v1659
    %v1712 = vadd.f32 %v1711, %v1662
    %v1713 = vadd.f32 %v1712, %v1665
    %v1714 = vadd.f32 %v1713, %v1668
    %v1715 = vadd.f32 %v1714, %v1671
    %v1716 = vadd.f32 %v1715, %v1674
    %v1717 = vadd.f32 %v1716, %v1677
    %v1718 = vadd.f32 %v1717, %v1680
    %v1719 = vadd.f32 %v1718, %v1683
    %v1720 = vadd.f32 %v1719, %v1686
    %v1721 = vadd.f32 %v1720, %v1689
    %v1722 = vrot.slane %v1721, 4
    %v1723 = vadd.f32 %v1721, %v1722
    %v1724 = vrot.slane %v1723, 2
    %v1725 = vadd.f32 %v1723, %v1724
    %v1726 = vrot.slane %v1725, 1
    %v1727 = vadd.f32 %v1725, %v1726
    %v1728 = vmul.f32 %v1596, %v1596
    %v1729 = vmul.f32 %v1599, %v1599
    %v1730 = vmul.f32 %v1602, %v1602
    %v1731 = vmul.f32 %v1605, %v1605
    %v1732 = vmul.f32 %v1608, %v1608
    %v1733 = vmul.f32 %v1611, %v1611
    %v1734 = vmul.f32 %v1614, %v1614
    %v1735 = vmul.f32 %v1617, %v1617
    %v1736 = vmul.f32 %v1620, %v1620
    %v1737 = vmul.f32 %v1623, %v1623
    %v1738 = vmul.f32 %v1626, %v1626
    %v1739 = vmul.f32 %v1629, %v1629
    %v1740 = vmul.f32 %v1632, %v1632
    %v1741 = vmul.f32 %v1635, %v1635
    %v1742 = vmul.f32 %v1638, %v1638
    %v1743 = vmul.f32 %v1641, %v1641
    %v1744 = vmul.f32 %v1644, %v1644
    %v1745 = vmul.f32 %v1647, %v1647
    %v1746 = vmul.f32 %v1650, %v1650
    %v1747 = vmul.f32 %v1653, %v1653
    %v1748 = vmul.f32 %v1656, %v1656
    %v1749 = vmul.f32 %v1659, %v1659
    %v1750 = vmul.f32 %v1662, %v1662
    %v1751 = vmul.f32 %v1665, %v1665
    %v1752 = vmul.f32 %v1668, %v1668
    %v1753 = vmul.f32 %v1671, %v1671
    %v1754 = vmul.f32 %v1674, %v1674
    %v1755 = vmul.f32 %v1677, %v1677
    %v1756 = vmul.f32 %v1680, %v1680
    %v1757 = vmul.f32 %v1683, %v1683
    %v1758 = vmul.f32 %v1686, %v1686
    %v1759 = vmul.f32 %v1689, %v1689
    %v1760 = vadd.f32 %v1728, %v1729
    %v1761 = vadd.f32 %v1760, %v1730
    %v1762 = vadd.f32 %v1761, %v1731
    %v1763 = vadd.f32 %v1762, %v1732
    %v1764 = vadd.f32 %v1763, %v1733
    %v1765 = vadd.f32 %v1764, %v1734
    %v1766 = vadd.f32 %v1765, %v1735
    %v1767 = vadd.f32 %v1766, %v1736
    %v1768 = vadd.f32 %v1767, %v1737
    %v1769 = vadd.f32 %v1768, %v1738
    %v1770 = vadd.f32 %v1769, %v1739
    %v1771 = vadd.f32 %v1770, %v1740
    %v1772 = vadd.f32 %v1771, %v1741
    %v1773 = vadd.f32 %v1772, %v1742
    %v1774 = vadd.f32 %v1773, %v1743
    %v1775 = vadd.f32 %v1774, %v1744
    %v1776 = vadd.f32 %v1775, %v1745
    %v1777 = vadd.f32 %v1776, %v1746
    %v1778 = vadd.f32 %v1777, %v1747
    %v1779 = vadd.f32 %v1778, %v1748
    %v1780 = vadd.f32 %v1779, %v1749
    %v1781 = vadd.f32 %v1780, %v1750
    %v1782 = vadd.f32 %v1781, %v1751
    %v1783 = vadd.f32 %v1782, %v1752
    %v1784 = vadd.f32 %v1783, %v1753
    %v1785 = vadd.f32 %v1784, %v1754
    %v1786 = vadd.f32 %v1785, %v1755
    %v1787 = vadd.f32 %v1786, %v1756
    %v1788 = vadd.f32 %v1787, %v1757
    %v1789 = vadd.f32 %v1788, %v1758
    %v1790 = vadd.f32 %v1789, %v1759
    %v1791 = vrot.slane %v1790, 4
    %v1792 = vadd.f32 %v1790, %v1791
    %v1793 = vrot.slane %v1792, 2
    %v1794 = vadd.f32 %v1792, %v1793
    %v1795 = vrot.slane %v1794, 1
    %v1796 = vadd.f32 %v1794, %v1795
    %v1797 = vmul.f32 %v1727, 0.00390625
    %v1798 = vmul.f32 %v1796, 0.00390625
    %v1799 = vmul.f32 %v1797, %v1797
    %v1800 = vsub.f32 %v1798, %v1799
    %v1801 = vmax.f32 %v1800, 0.0
    %v1802 = vld [vmem:[%s2 + $0x8] sm:$0x1]
    %v1803 = vld [vmem:[%s2 + $0x9] sm:$0x1]
    %v1804 = vadd.f32 %v1801, 1e-05
    %v1805 = vrsqrt.pop %v1804
    %v1806 = vmul.f32 %v1805, %v1804
    %v1807 = vmul.f32 %v1806, %v1805
    %v1808 = vmul.f32 0.5, %v1807
    %v1809 = vsub.f32 1.5, %v1808
    %v1810 = vmul.f32 %v1805, %v1809
    %vm1811 = vweird.f32 %v1804
    %vm1812 = vweird.f32 %v1805
    %vm1813 = vmor %vm1811, %vm1812
    %v1814 = vsel %vm1813, %v1805, %v1810
    %v1815 = vmul.f32 %v1802, %v1814
    %v1816 = vmul.f32 %v1797, %v1815
    %v1817 = vsub.f32 %v1803, %v1816
    %v1818 = vperm.slane %v1815, 0
    %v1819 = vmul.f32 %v1596, %v1818
    %v1820 = vmul.f32 %v1599, %v1818
    %v1821 = vmul.f32 %v1602, %v1818
    %v1822 = vmul.f32 %v1605, %v1818
    %v1823 = vmul.f32 %v1608, %v1818
    %v1824 = vmul.f32 %v1611, %v1818
    %v1825 = vmul.f32 %v1614, %v1818
    %v1826 = vmul.f32 %v1617, %v1818
    %v1827 = vmul.f32 %v1620, %v1818
    %v1828 = vmul.f32 %v1623, %v1818
    %v1829 = vmul.f32 %v1626, %v1818
    %v1830 = vmul.f32 %v1629, %v1818
    %v1831 = vmul.f32 %v1632, %v1818
    %v1832 = vmul.f32 %v1635, %v1818
    %v1833 = vmul.f32 %v1638, %v1818
    %v1834 = vmul.f32 %v1641, %v1818
    %v1835 = vmul.f32 %v1644, %v1818
    %v1836 = vmul.f32 %v1647, %v1818
    %v1837 = vmul.f32 %v1650, %v1818
    %v1838 = vmul.f32 %v1653, %v1818
    %v1839 = vmul.f32 %v1656, %v1818
    %v1840 = vmul.f32 %v1659, %v1818
    %v1841 = vmul.f32 %v1662, %v1818
    %v1842 = vmul.f32 %v1665, %v1818
    %v1843 = vmul.f32 %v1668, %v1818
    %v1844 = vmul.f32 %v1671, %v1818
    %v1845 = vmul.f32 %v1674, %v1818
    %v1846 = vmul.f32 %v1677, %v1818
    %v1847 = vmul.f32 %v1680, %v1818
    %v1848 = vmul.f32 %v1683, %v1818
    %v1849 = vmul.f32 %v1686, %v1818
    %v1850 = vmul.f32 %v1689, %v1818
    %v1851 = vperm.slane %v1817, 0
    %v1852 = vadd.f32 %v1819, %v1851
    %v1853 = vadd.f32 %v1820, %v1851
    %v1854 = vadd.f32 %v1821, %v1851
    %v1855 = vadd.f32 %v1822, %v1851
    %v1856 = vadd.f32 %v1823, %v1851
    %v1857 = vadd.f32 %v1824, %v1851
    %v1858 = vadd.f32 %v1825, %v1851
    %v1859 = vadd.f32 %v1826, %v1851
    %v1860 = vadd.f32 %v1827, %v1851
    %v1861 = vadd.f32 %v1828, %v1851
    %v1862 = vadd.f32 %v1829, %v1851
    %v1863 = vadd.f32 %v1830, %v1851
    %v1864 = vadd.f32 %v1831, %v1851
    %v1865 = vadd.f32 %v1832, %v1851
    %v1866 = vadd.f32 %v1833, %v1851
    %v1867 = vadd.f32 %v1834, %v1851
    %v1868 = vadd.f32 %v1835, %v1851
    %v1869 = vadd.f32 %v1836, %v1851
    %v1870 = vadd.f32 %v1837, %v1851
    %v1871 = vadd.f32 %v1838, %v1851
    %v1872 = vadd.f32 %v1839, %v1851
    %v1873 = vadd.f32 %v1840, %v1851
    %v1874 = vadd.f32 %v1841, %v1851
    %v1875 = vadd.f32 %v1842, %v1851
    %v1876 = vadd.f32 %v1843, %v1851
    %v1877 = vadd.f32 %v1844, %v1851
    %v1878 = vadd.f32 %v1845, %v1851
    %v1879 = vadd.f32 %v1846, %v1851
    %v1880 = vadd.f32 %v1847, %v1851
    %v1881 = vadd.f32 %v1848, %v1851
    %v1882 = vadd.f32 %v1849, %v1851
    %v1883 = vadd.f32 %v1850, %v1851
    %v1884 = vmax.f32 %v1852, 0.0
    %v1885 = vmax.f32 %v1853, 0.0
    %v1886 = vmax.f32 %v1854, 0.0
    %v1887 = vmax.f32 %v1855, 0.0
    %v1888 = vmax.f32 %v1856, 0.0
    %v1889 = vmax.f32 %v1857, 0.0
    %v1890 = vmax.f32 %v1858, 0.0
    %v1891 = vmax.f32 %v1859, 0.0
    %v1892 = vmax.f32 %v1860, 0.0
    %v1893 = vmax.f32 %v1861, 0.0
    %v1894 = vmax.f32 %v1862, 0.0
    %v1895 = vmax.f32 %v1863, 0.0
    %v1896 = vmax.f32 %v1864, 0.0
    %v1897 = vmax.f32 %v1865, 0.0
    %v1898 = vmax.f32 %v1866, 0.0
    %v1899 = vmax.f32 %v1867, 0.0
    %v1900 = vmax.f32 %v1868, 0.0
    %v1901 = vmax.f32 %v1869, 0.0
    %v1902 = vmax.f32 %v1870, 0.0
    %v1903 = vmax.f32 %v1871, 0.0
    %v1904 = vmax.f32 %v1872, 0.0
    %v1905 = vmax.f32 %v1873, 0.0
    %v1906 = vmax.f32 %v1874, 0.0
    %v1907 = vmax.f32 %v1875, 0.0
    %v1908 = vmax.f32 %v1876, 0.0
    %v1909 = vmax.f32 %v1877, 0.0
    %v1910 = vmax.f32 %v1878, 0.0
    %v1911 = vmax.f32 %v1879, 0.0
    %v1912 = vmax.f32 %v1880, 0.0
    %v1913 = vmax.f32 %v1881, 0.0
    %v1914 = vmax.f32 %v1882, 0.0
    %v1915 = vmax.f32 %v1883, 0.0
    %v1916 = vld [vmem:[#allocation2 + $0x280] sm:$0xff]
    %v1917 = vld [vmem:[#allocation2 + $0x288] sm:$0xff]
    %v1918 = vld [vmem:[#allocation2 + $0x290] sm:$0xff]
    %v1919 = vld [vmem:[#allocation2 + $0x298] sm:$0xff]
    %v1920 = vld [vmem:[#allocation2 + $0x2a0] sm:$0xff]
    %v1921 = vld [vmem:[#allocation2 + $0x2a8] sm:$0xff]
    %v1922 = vld [vmem:[#allocation2 + $0x2b0] sm:$0xff]
    %v1923 = vld [vmem:[#allocation2 + $0x2b8] sm:$0xff]
    %v1924 = vld [vmem:[#allocation2 + $0x2c0] sm:$0xff]
    %v1925 = vld [vmem:[#allocation2 + $0x2c8] sm:$0xff]
    %v1926 = vld [vmem:[#allocation2 + $0x2d0] sm:$0xff]
    %v1927 = vld [vmem:[#allocation2 + $0x2d8] sm:$0xff]
    %v1928 = vld [vmem:[#allocation2 + $0x2e0] sm:$0xff]
    %v1929 = vld [vmem:[#allocation2 + $0x2e8] sm:$0xff]
    %v1930 = vld [vmem:[#allocation2 + $0x2f0] sm:$0xff]
    %v1931 = vld [vmem:[#allocation2 + $0x2f8] sm:$0xff]
    %v1932 = vld [vmem:[%s2 + $0xa] sm:$0x1]
    %v1933 = vperm.slane %v1932, 0
    %1934 = vmatpush.msra.mxu0 %v1931
    %1935 = vmatpush.msra.mxu0 %v1930
    %1936 = vmatpush.msra.mxu0 %v1929
    %1937 = vmatpush.msra.mxu0 %v1928
    %1938 = vmatpush.msra.mxu0 %v1927
    %1939 = vmatpush.msra.mxu0 %v1926
    %1940 = vmatpush.msra.mxu0 %v1925
    %1941 = vmatpush.msra.mxu0 %v1924
    %1942 = vmatpush.msra.mxu0 %v1923
    %1943 = vmatpush.msra.mxu0 %v1922
    %1944 = vmatpush.msra.mxu0 %v1921
    %1945 = vmatpush.msra.mxu0 %v1920
    %1946 = vmatpush.msra.mxu0 %v1919
    %1947 = vmatpush.msra.mxu0 %v1918
    %1948 = vmatpush.msra.mxu0 %v1917
    %1949 = vmatpush.msra.mxu0 %v1916
    %1950 = vmatmul.f32.gmra.mxu0 %v1884
    %v1951 = vpop.f32.mrf.mxu0
    %v1952 = vadd.f32 %v1933, %v1951
    %1953 = vmatmul.f32.gmra.mxu0 %v1885
    %v1954 = vpop.f32.mrf.mxu0
    %v1955 = vadd.f32 %v1933, %v1954
    %1956 = vmatmul.f32.gmra.mxu0 %v1886
    %v1957 = vpop.f32.mrf.mxu0
    %v1958 = vadd.f32 %v1933, %v1957
    %1959 = vmatmul.f32.gmra.mxu0 %v1887
    %v1960 = vpop.f32.mrf.mxu0
    %v1961 = vadd.f32 %v1933, %v1960
    %1962 = vmatmul.f32.gmra.mxu0 %v1888
    %v1963 = vpop.f32.mrf.mxu0
    %v1964 = vadd.f32 %v1933, %v1963
    %1965 = vmatmul.f32.gmra.mxu0 %v1889
    %v1966 = vpop.f32.mrf.mxu0
    %v1967 = vadd.f32 %v1933, %v1966
    %1968 = vmatmul.f32.gmra.mxu0 %v1890
    %v1969 = vpop.f32.mrf.mxu0
    %v1970 = vadd.f32 %v1933, %v1969
    %1971 = vmatmul.f32.gmra.mxu0 %v1891
    %v1972 = vpop.f32.mrf.mxu0
    %v1973 = vadd.f32 %v1933, %v1972
    %1974 = vmatmul.f32.gmra.mxu0 %v1892
    %v1975 = vpop.f32.mrf.mxu0
    %v1976 = vadd.f32 %v1933, %v1975
    %1977 = vmatmul.f32.gmra.mxu0 %v1893
    %v1978 = vpop.f32.mrf.mxu0
    %v1979 = vadd.f32 %v1933, %v1978
    %1980 = vmatmul.f32.gmra.mxu0 %v1894
    %v1981 = vpop.f32.mrf.mxu0
    %v1982 = vadd.f32 %v1933, %v1981
    %1983 = vmatmul.f32.gmra.mxu0 %v1895
    %v1984 = vpop.f32.mrf.mxu0
    %v1985 = vadd.f32 %v1933, %v1984
    %1986 = vmatmul.f32.gmra.mxu0 %v1896
    %v1987 = vpop.f32.mrf.mxu0
    %v1988 = vadd.f32 %v1933, %v1987
    %1989 = vmatmul.f32.gmra.mxu0 %v1897
    %v1990 = vpop.f32.mrf.mxu0
    %v1991 = vadd.f32 %v1933, %v1990
    %1992 = vmatmul.f32.gmra.mxu0 %v1898
    %v1993 = vpop.f32.mrf.mxu0
    %v1994 = vadd.f32 %v1933, %v1993
    %1995 = vmatmul.f32.gmra.mxu0 %v1899
    %v1996 = vpop.f32.mrf.mxu0
    %v1997 = vadd.f32 %v1933, %v1996
    %1998 = vmatmul.f32.gmra.mxu0 %v1900
    %v1999 = vpop.f32.mrf.mxu0
    %v2000 = vadd.f32 %v1933, %v1999
    %2001 = vmatmul.f32.gmra.mxu0 %v1901
    %v2002 = vpop.f32.mrf.mxu0
    %v2003 = vadd.f32 %v1933, %v2002
    %2004 = vmatmul.f32.gmra.mxu0 %v1902
    %v2005 = vpop.f32.mrf.mxu0
    %v2006 = vadd.f32 %v1933, %v2005
    %2007 = vmatmul.f32.gmra.mxu0 %v1903
    %v2008 = vpop.f32.mrf.mxu0
    %v2009 = vadd.f32 %v1933, %v2008
    %2010 = vmatmul.f32.gmra.mxu0 %v1904
    %v2011 = vpop.f32.mrf.mxu0
    %v2012 = vadd.f32 %v1933, %v2011
    %2013 = vmatmul.f32.gmra.mxu0 %v1905
    %v2014 = vpop.f32.mrf.mxu0
    %v2015 = vadd.f32 %v1933, %v2014
    %2016 = vmatmul.f32.gmra.mxu0 %v1906
    %v2017 = vpop.f32.mrf.mxu0
    %v2018 = vadd.f32 %v1933, %v2017
    %2019 = vmatmul.f32.gmra.mxu0 %v1907
    %v2020 = vpop.f32.mrf.mxu0
    %v2021 = vadd.f32 %v1933, %v2020
    %2022 = vmatmul.f32.gmra.mxu0 %v1908
    %v2023 = vpop.f32.mrf.mxu0
    %v2024 = vadd.f32 %v1933, %v2023
    %2025 = vmatmul.f32.gmra.mxu0 %v1909
    %v2026 = vpop.f32.mrf.mxu0
    %v2027 = vadd.f32 %v1933, %v2026
    %2028 = vmatmul.f32.gmra.mxu0 %v1910
    %v2029 = vpop.f32.mrf.mxu0
    %v2030 = vadd.f32 %v1933, %v2029
    %2031 = vmatmul.f32.gmra.mxu0 %v1911
    %v2032 = vpop.f32.mrf.mxu0
    %v2033 = vadd.f32 %v1933, %v2032
    %2034 = vmatmul.f32.gmra.mxu0 %v1912
    %v2035 = vpop.f32.mrf.mxu0
    %v2036 = vadd.f32 %v1933, %v2035
    %2037 = vmatmul.f32.gmra.mxu0 %v1913
    %v2038 = vpop.f32.mrf.mxu0
    %v2039 = vadd.f32 %v1933, %v2038
    %2040 = vmatmul.f32.gmra.mxu0 %v1914
    %v2041 = vpop.f32.mrf.mxu0
    %v2042 = vadd.f32 %v1933, %v2041
    %2043 = vmatmul.f32.gmra.mxu0 %v1915
    %v2044 = vpop.f32.mrf.mxu0
    %v2045 = vadd.f32 %v1933, %v2044
    %2046 = vdwg.mxu0
    %2047 = vst [vmem:[#allocation5] sm:$0xff] %v1952
    %2048 = vst [vmem:[#allocation5 + $0x8] sm:$0xff] %v1955
    %2049 = vst [vmem:[#allocation5 + $0x10] sm:$0xff] %v1958
    %2050 = vst [vmem:[#allocation5 + $0x18] sm:$0xff] %v1961
    %2051 = vst [vmem:[#allocation5 + $0x20] sm:$0xff] %v1964
    %2052 = vst [vmem:[#allocation5 + $0x28] sm:$0xff] %v1967
    %2053 = vst [vmem:[#allocation5 + $0x30] sm:$0xff] %v1970
    %2054 = vst [vmem:[#allocation5 + $0x38] sm:$0xff] %v1973
    %2055 = vst [vmem:[#allocation5 + $0x40] sm:$0xff] %v1976
    %2056 = vst [vmem:[#allocation5 + $0x48] sm:$0xff] %v1979
    %2057 = vst [vmem:[#allocation5 + $0x50] sm:$0xff] %v1982
    %2058 = vst [vmem:[#allocation5 + $0x58] sm:$0xff] %v1985
    %2059 = vst [vmem:[#allocation5 + $0x60] sm:$0xff] %v1988
    %2060 = vst [vmem:[#allocation5 + $0x68] sm:$0xff] %v1991
    %2061 = vst [vmem:[#allocation5 + $0x70] sm:$0xff] %v1994
    %2062 = vst [vmem:[#allocation5 + $0x78] sm:$0xff] %v1997
    %2063 = vst [vmem:[#allocation5 + $0x80] sm:$0xff] %v2000
    %2064 = vst [vmem:[#allocation5 + $0x88] sm:$0xff] %v2003
    %2065 = vst [vmem:[#allocation5 + $0x90] sm:$0xff] %v2006
    %2066 = vst [vmem:[#allocation5 + $0x98] sm:$0xff] %v2009
    %2067 = vst [vmem:[#allocation5 + $0xa0] sm:$0xff] %v2012
    %2068 = vst [vmem:[#allocation5 + $0xa8] sm:$0xff] %v2015
    %2069 = vst [vmem:[#allocation5 + $0xb0] sm:$0xff] %v2018
    %2070 = vst [vmem:[#allocation5 + $0xb8] sm:$0xff] %v2021
    %2071 = vst [vmem:[#allocation5 + $0xc0] sm:$0xff] %v2024
    %2072 = vst [vmem:[#allocation5 + $0xc8] sm:$0xff] %v2027
    %2073 = vst [vmem:[#allocation5 + $0xd0] sm:$0xff] %v2030
    %2074 = vst [vmem:[#allocation5 + $0xd8] sm:$0xff] %v2033
    %2075 = vst [vmem:[#allocation5 + $0xe0] sm:$0xff] %v2036
    %2076 = vst [vmem:[#allocation5 + $0xe8] sm:$0xff] %v2039
    %2077 = vst [vmem:[#allocation5 + $0xf0] sm:$0xff] %v2042
    %2078 = vst [vmem:[#allocation5 + $0xf8] sm:$0xff] %v2045
    // Predicated region
    $region18: #{tpu_custom_call.1} parent=1 // pred_check
      _
    $region19: #{tpu_custom_call.1} parent=1 // pred_check_branch
      %2080 = sbr.rel (0) target = $region21
    $region20: #{tpu_custom_call.1} parent=1 // pred_region
      %2082 = vsyncadd [#allocation4], 0
      %s2083 = sshll.u32 [#allocation5], 4
      %s2084 = int_to_ptr.vmem [resolvable:$true] %s2083
      %s2085 = sshll.u32 %s3, 4
      %s2086 = int_to_ptr.hbm [resolvable:$true] %s2085
      %2091 = dma.vmem_to_hbm [thread:$0]  %s2084, 4096, %s2086, [#allocation4], 128, 128, 8
    $region21: #{tpu_custom_call.1} parent=1 // pred_fallthru
      _
    // Predicated region
    $region22: #{tpu_custom_call.1} parent=1 // pred_check
      _
    $region23: #{tpu_custom_call.1} parent=1 // pred_check_branch
      %2093 = sbr.rel (0) target = $region25
    $region24: #{tpu_custom_call.1} parent=1 // pred_region
      %2095 = dma.done [#allocation4], 4096
    $region25: #{tpu_custom_call.1} parent=1 // pred_fallthru
      _
    %2096 = vsyncpa [#allocation3], 1
    %2097 = vsyncpa [#allocation4], 1

</llo_original>
